<compile_context>
chip_gen: v5e
topology: v5e:2x2
jax: 0.10.0
libtpu: 0.0.40
codegen_flags: <defaults>
</compile_context>

<pallas_src>
import functools

import jax
import jax.numpy as jnp
from jax.experimental import pallas as pl
from jax.experimental.pallas import tpu as pltpu


IMG_DIM = 28 * 28 * 1   # 784
HIDDEN = 128
OUT = 1

_LANE = 128             # lane width; lane-dense output requires tb % 128 == 0
_TILE_ROUND = 256       # bf16 sublane packing (16) + MXU M-pass granularity (256)
_VMEM_LIMIT_BYTES = 48 * 1024 * 1024   # fits TB=4096 f32 double-buffer; < v7x 64 MiB physical


def _discriminator_kernel(x_ref, w1_ref, b1_ref, w2_ref, b2_ref, o_ref):
    # x:  (TB, IMG_DIM)  in incoming dtype (f32 or bf16)
    # w1: (IMG_DIM, HIDDEN) bf16      b1: (1, HIDDEN) f32
    # w2: (1, HIDDEN)    f32          b2: (1, 1) f32 in SMEM
    # o:  (1, TB//128, 128) f32  (lane-dense view of the (TB, 1) result)
    rows = o_ref.shape[1]                                   # TB // 128

    # In-kernel cast to bf16 (free VPU work under the DMA bottleneck); f32 MXU accumulation.
    x_bf16 = x_ref[...].astype(jnp.bfloat16)
    h = jnp.dot(x_bf16, w1_ref[...], preferred_element_type=jnp.float32)   # (TB, HIDDEN)
    h = h + b1_ref[...]
    # LeakyReLU(0.01): single VALU max.
    h = jnp.maximum(h, 0.01 * h)

    # Linear(128, 1) as a VPU multiply + last-axis reduce, producing the result
    # directly in a lane-dense (rows, 128) layout: element (r, c) is batch row r*128+c.
    hb = h.reshape(rows, _LANE, HIDDEN)                     # cheap: minor dim unchanged
    z = jnp.sum(hb * w2_ref[...], axis=-1) + b2_ref[0, 0]   # (rows, 128)

    # Numerically stable sigmoid (no overflow for large |z|).
    ez = jnp.exp(-jnp.abs(z))                               # in (0, 1]
    inv = pl.reciprocal(1.0 + ez, approx=False)
    o_ref[0] = jnp.where(z >= 0.0, inv, ez * inv).astype(o_ref.dtype)


def _round_up(n, m):
    return -(-n // m) * m


def _choose_tile(batch, block_batch):
    """Balanced batch tiles: bounded padding, >=2 grid steps when batch allows (v7x)."""
    num_tiles = max(1, -(-batch // block_batch))
    if num_tiles == 1 and batch > 2 * _TILE_ROUND:
        num_tiles = 2   # keep both v7x TensorCores busy; harmless on v5e/v6e
    tb = _round_up(-(-batch // num_tiles), _TILE_ROUND)
    padded = _round_up(batch, tb)
    return tb, padded, padded // tb


def prepare_params(w1, b1, w2, b2):
    """One-time conversion to the kernel layout. Call OUTSIDE the per-step jit."""
    return (
        jnp.asarray(w1, jnp.bfloat16),                         # (IMG_DIM, HIDDEN) bf16
        jnp.asarray(b1, jnp.float32).reshape(1, HIDDEN),       # (1, HIDDEN)
        jnp.asarray(w2, jnp.float32).reshape(1, HIDDEN),       # (HIDDEN, 1) -> row vector
        jnp.asarray(b2, jnp.float32).reshape(1, 1),            # scalar for SMEM
    )


@functools.partial(jax.jit, static_argnames=("block_batch",))
def discriminator_forward(x, w1_bf16, b1_row, w2_row, b2_s, *, block_batch=4096):
    """sigmoid(leaky_relu(x @ w1 + b1, 0.01) @ w2 + b2) -> (batch, 1) f32.

    x: (batch, IMG_DIM), f32 or bf16 (streamed at incoming dtype, cast in-kernel).
    Params must come from prepare_params().
    NOTE: block_batch > 4096 with f32 x needs a larger _VMEM_LIMIT_BYTES on v7x.
    """
    batch = x.shape[0]
    tb, padded, num_tiles = _choose_tile(batch, block_batch)
    if padded != batch:
        x = jnp.pad(x, ((0, padded - batch), (0, 0)))
    rows = tb // _LANE

    out = pl.pallas_call(
        _discriminator_kernel,
        out_shape=jax.ShapeDtypeStruct((num_tiles, rows, _LANE), jnp.float32),
        grid=(num_tiles,),
        in_specs=[
            pl.BlockSpec((tb, IMG_DIM), lambda i: (i, 0)),        # x: streamed per tile
            pl.BlockSpec((IMG_DIM, HIDDEN), lambda i: (0, 0)),    # w1: VMEM-resident
            pl.BlockSpec((1, HIDDEN), lambda i: (0, 0)),          # b1: VMEM-resident
            pl.BlockSpec((1, HIDDEN), lambda i: (0, 0)),          # w2 row: VMEM-resident
            pl.BlockSpec(memory_space=pltpu.MemorySpace.SMEM),    # b2: scalar in SMEM
        ],
        # 3-D lane-dense output: block covers the full last two dims, so stores
        # are unmasked full-lane vst's and no 128x lane-padding is wasted.
        out_specs=pl.BlockSpec((1, rows, _LANE), lambda i: (i, 0, 0)),
        compiler_params=pltpu.CompilerParams(
            dimension_semantics=("parallel",),
            vmem_limit_bytes=_VMEM_LIMIT_BYTES,
        ),
    )(x, w1_bf16, b1_row, w2_row, b2_s)

    # (num_tiles, tb//128, 128) row-major == original row order.
    return out.reshape(padded, 1)[:batch]


def init_params(key):
    # Deterministic init mimicking nn.Linear's U(-1/sqrt(in), 1/sqrt(in)).
    k1, k2, k3, k4 = jax.random.split(key, 4)
    lim1 = 1.0 / jnp.sqrt(IMG_DIM)
    lim2 = 1.0 / jnp.sqrt(HIDDEN)
    w1 = jax.random.uniform(k1, (IMG_DIM, HIDDEN), jnp.float32, -lim1, lim1)
    b1 = jax.random.uniform(k2, (1, HIDDEN), jnp.float32, -lim1, lim1)
    w2 = jax.random.uniform(k3, (HIDDEN, OUT), jnp.float32, -lim2, lim2)
    b2 = jax.random.uniform(k4, (1, OUT), jnp.float32, -lim2, lim2)
    return w1, b1, w2, b2


def reference_forward(x, w1, b1, w2, b2):
    h = x @ w1 + b1.reshape(1, HIDDEN)
    h = jnp.where(h >= 0, h, 0.01 * h)
    z = h @ w2 + b2.reshape(1, OUT)
    return jax.nn.sigmoid(z)


if __name__ == "__main__":
    key = jax.random.PRNGKey(0)
    kx, kp = jax.random.split(key)
    w1, b1, w2, b2 = init_params(kp)
    params = prepare_params(w1, b1, w2, b2)   # one-time bf16 / layout conversion

    ok = True
    for batch in (4, 37, 600):   # small; 37 exercises padding, 600 the multi-tile path
        x = jax.random.normal(jax.random.fold_in(kx, batch), (batch, IMG_DIM), jnp.float32)
        out = jax.block_until_ready(discriminator_forward(x, *params))
        ref = reference_forward(x, w1, b1, w2, b2)
        ok &= out.shape == (batch, OUT)
        # bf16 first matmul -> relaxed tolerance vs the f32 reference.
        ok &= bool(jnp.allclose(out, ref, atol=2e-2, rtol=2e-2))

    assert ok
    print("KERNEL_OK")
</pallas_src>

<mosaic_0001>
module attributes {stable_mosaic.version = 11 : i64} {
  func.func @_discriminator_kernel(%arg0: i32, %arg1: memref<256x784xf32, #tpu.memory_space<vmem>>, %arg2: memref<784x128xbf16, #tpu.memory_space<vmem>>, %arg3: memref<1x128xf32, #tpu.memory_space<vmem>>, %arg4: memref<1x128xf32, #tpu.memory_space<vmem>>, %arg5: memref<1x1xf32, #tpu.memory_space<smem>>, %arg6: memref<1x2x128xf32, #tpu.memory_space<vmem>>) attributes {dimension_semantics = [#tpu.dimension_semantics<parallel>], iteration_bounds = array<i64: 1>, scalar_prefetch = 0 : i64, scratch_operands = 0 : i64, tpu.core_type = #tpu.core_type<tc>, window_params = [{transform_indices = @transform_0, window_bounds = array<i64: 256, 784>}, {pipeline_mode = #tpu.pipeline_mode<synchronous>, transform_indices = @transform_1, window_bounds = array<i64: 784, 128>}, {pipeline_mode = #tpu.pipeline_mode<synchronous>, transform_indices = @transform_2, window_bounds = array<i64: 1, 128>}, {pipeline_mode = #tpu.pipeline_mode<synchronous>, transform_indices = @transform_3, window_bounds = array<i64: 1, 128>}, {transform_indices = @transform_4, window_bounds = array<i64: 1, 1>}, {transform_indices = @transform_5, window_bounds = array<i64: 1, 2, 128>}]} {
    %c0 = arith.constant 0 : index
    %c0_0 = arith.constant 0 : index
    %0 = vector.load %arg1[%c0, %c0_0] : memref<256x784xf32, #tpu.memory_space<vmem>>, vector<256x784xf32>
    %1 = arith.truncf %0 : vector<256x784xf32> to vector<256x784xbf16>
    %c0_1 = arith.constant 0 : index
    %c0_2 = arith.constant 0 : index
    %2 = vector.load %arg2[%c0_1, %c0_2] : memref<784x128xbf16, #tpu.memory_space<vmem>>, vector<784x128xbf16>
    %cst = arith.constant dense<0.000000e+00> : vector<256x128xf32>
    %3 = tpu.matmul %1, %2, %cst {dimension_numbers = #tpu.dot_dimension_numbers<[1], [0], [0], [1], [0, 0, 1, 1], [], []>} : vector<256x784xbf16>, vector<784x128xbf16>, vector<256x128xf32> -> vector<256x128xf32>
    %c0_3 = arith.constant 0 : index
    %c0_4 = arith.constant 0 : index
    %4 = vector.load %arg3[%c0_3, %c0_4] : memref<1x128xf32, #tpu.memory_space<vmem>>, vector<1x128xf32>
    %5 = vector.broadcast %4 : vector<1x128xf32> to vector<256x128xf32>
    %6 = arith.addf %3, %5 : vector<256x128xf32>
    %cst_5 = arith.constant 0.00999999977 : f32
    %7 = vector.broadcast %cst_5 : f32 to vector<256x128xf32>
    %8 = arith.mulf %7, %6 : vector<256x128xf32>
    %9 = arith.maximumf %6, %8 : vector<256x128xf32>
    %10 = vector.shape_cast %9 : vector<256x128xf32> to vector<2x128x128xf32>
    %c0_6 = arith.constant 0 : index
    %c0_7 = arith.constant 0 : index
    %11 = vector.load %arg4[%c0_6, %c0_7] : memref<1x128xf32, #tpu.memory_space<vmem>>, vector<1x128xf32>
    %12 = vector.shape_cast %11 : vector<1x128xf32> to vector<1x1x128xf32>
    %13 = vector.broadcast %12 : vector<1x1x128xf32> to vector<2x128x128xf32>
    %14 = arith.mulf %10, %13 : vector<2x128x128xf32>
    %cst_8 = arith.constant dense<0.000000e+00> : vector<2x128xf32>
    %15 = vector.multi_reduction <add>, %14, %cst_8 [2] : vector<2x128x128xf32> to vector<2x128xf32>
    %c0_9 = arith.constant 0 : index
    %c0_10 = arith.constant 0 : index
    %16 = memref.load %arg5[%c0_9, %c0_10] : memref<1x1xf32, #tpu.memory_space<smem>>
    %17 = vector.broadcast %16 : f32 to vector<2x128xf32>
    %18 = arith.addf %15, %17 : vector<2x128xf32>
    %19 = math.absf %18 : vector<2x128xf32>
    %cst_11 = arith.constant 0.000000e+00 : f32
    %20 = vector.broadcast %cst_11 : f32 to vector<2x128xf32>
    %21 = arith.subf %20, %19 : vector<2x128xf32>
    %22 = math.exp %21 : vector<2x128xf32>
    %cst_12 = arith.constant 1.000000e+00 : f32
    %23 = vector.broadcast %cst_12 : f32 to vector<2x128xf32>
    %24 = arith.addf %23, %22 : vector<2x128xf32>
    %25 = tpu.reciprocal %24 : vector<2x128xf32> -> vector<2x128xf32>
    %cst_13 = arith.constant 0.000000e+00 : f32
    %26 = vector.broadcast %cst_13 : f32 to vector<2x128xf32>
    %27 = arith.cmpf oge, %18, %26 : vector<2x128xf32>
    %28 = arith.mulf %22, %25 : vector<2x128xf32>
    %29 = arith.select %27, %25, %28 : vector<2x128xi1>, vector<2x128xf32>
    %c0_14 = arith.constant 0 : index
    %c0_15 = arith.constant 0 : index
    %c0_16 = arith.constant 0 : index
    %30 = vector.load %arg6[%c0_14, %c0_15, %c0_16] : memref<1x2x128xf32, #tpu.memory_space<vmem>>, vector<1x2x128xf32>
    %31 = vector.shape_cast %30 : vector<1x2x128xf32> to vector<2x128xf32>
    %32 = vector.shape_cast %29 : vector<2x128xf32> to vector<1x2x128xf32>
    tpu.vector_store %arg6[%c0_14, %c0_15, %c0_16], %32 {strides = array<i32>} : memref<1x2x128xf32, #tpu.memory_space<vmem>>, vector<1x2x128xf32>,
    return
  }
  func.func @transform_0(%arg0: i32) -> (i32, i32) {
    %c0_i32 = arith.constant 0 : i32
    %c0_i32_0 = arith.constant 0 : i32
    return %arg0, %c0_i32 : i32, i32
  }
  func.func @transform_1(%arg0: i32) -> (i32, i32) {
    %c0_i32 = arith.constant 0 : i32
    %c0_i32_0 = arith.constant 0 : i32
    %c0_i32_1 = arith.constant 0 : i32
    return %c0_i32, %c0_i32_0 : i32, i32
  }
  func.func @transform_2(%arg0: i32) -> (i32, i32) {
    %c0_i32 = arith.constant 0 : i32
    %c0_i32_0 = arith.constant 0 : i32
    %c0_i32_1 = arith.constant 0 : i32
    return %c0_i32, %c0_i32_0 : i32, i32
  }
  func.func @transform_3(%arg0: i32) -> (i32, i32) {
    %c0_i32 = arith.constant 0 : i32
    %c0_i32_0 = arith.constant 0 : i32
    %c0_i32_1 = arith.constant 0 : i32
    return %c0_i32, %c0_i32_0 : i32, i32
  }
  func.func @transform_4(%arg0: i32) -> (i32, i32) {
    %c0_i32 = arith.constant 0 : i32
    %c0_i32_0 = arith.constant 0 : i32
    %c0_i32_1 = arith.constant 0 : i32
    return %c0_i32, %c0_i32_0 : i32, i32
  }
  func.func @transform_5(%arg0: i32) -> (i32, i32, i32) {
    %c0_i32 = arith.constant 0 : i32
    %c0_i32_0 = arith.constant 0 : i32
    %c0_i32_1 = arith.constant 0 : i32
    return %arg0, %c0_i32, %c0_i32_0 : i32, i32, i32
  }
}

</mosaic_0001>

<llo_original>
// kernel: discriminator_forward.1
$region0: #{discriminator_forward.1}
  #allocation0 [shape = 'u32[]', space=smem, size = 0x4, offset = 0x4, fixed_abs, tag = 'smem constant byte address 0x4 - core index']
  #allocation1 [shape = 'u32[72,128]{1,0:T(1,128)}', space=vmem, size = 0x9000, scoped, tag = 'internal scratch']
  #allocation2 [shape = 'f32[1,1]{1,0:T(1,128)S(6)}', space=smem, size = 0x200, scoped, tag = 'scoped memory for discriminator_forward.1']
  %s0 = inlined_call_operand.vmem [shape: f32[256,784], index: 0, kind: input, shape index: {}]
  %s1 = inlined_call_operand.vmem [shape: bf16[784,128], index: 1, kind: input, shape index: {}]
  %s2 = inlined_call_operand.vmem [shape: f32[1,128], index: 2, kind: input, shape index: {}]
  %s3 = inlined_call_operand.vmem [shape: f32[1,128], index: 3, kind: input, shape index: {}]
  %s4 = inlined_call_operand.<no memory space> [shape: f32[1,1], index: 4, kind: input, shape index: {}]
  %s5 = inlined_call_operand.vmem [shape: f32[1,2,128], index: 5, kind: output, shape index: {}]
  %s6 = sld [smem:[#allocation0]]
  $region30: #{discriminator_forward.1} parent=0
    _
  %s8 = ssub.s32 1, %s6
  %s9 = scalar_select 0, %s8, %s6
  %10 = sst [smem:[#allocation2]] %s4
  // Predicated region
  $region2: #{discriminator_forward.1} parent=0 // pred_check
    _
  $region3: #{discriminator_forward.1} parent=0 // pred_check_branch
    %12 = sbr.rel (0) target = $region5
  $region4: #{discriminator_forward.1} parent=0 // pred_region
    _
  $region5: #{discriminator_forward.1} parent=0 // pred_fallthru
    _
  // Predicated region
  $region6: #{discriminator_forward.1} parent=0 // pred_check
    _
  $region7: #{discriminator_forward.1} parent=0 // pred_check_branch
    %14 = sbr.rel (0) target = $region9
  $region8: #{discriminator_forward.1} parent=0 // pred_region
    _
  $region9: #{discriminator_forward.1} parent=0 // pred_fallthru
    _
  // Predicated region
  $region10: #{discriminator_forward.1} parent=0 // pred_check
    _
  $region11: #{discriminator_forward.1} parent=0 // pred_check_branch
    %16 = sbr.rel (0) target = $region13
  $region12: #{discriminator_forward.1} parent=0 // pred_region
    _
  $region13: #{discriminator_forward.1} parent=0 // pred_fallthru
    _
  // Predicated region
  $region14: #{discriminator_forward.1} parent=0 // pred_check
    _
  $region15: #{discriminator_forward.1} parent=0 // pred_check_branch
    %18 = sbr.rel (0) target = $region17
  $region16: #{discriminator_forward.1} parent=0 // pred_region
    _
  $region17: #{discriminator_forward.1} parent=0 // pred_fallthru
    _
  // Predicated region
  $region18: #{discriminator_forward.1} parent=0 // pred_check
    _
  $region19: #{discriminator_forward.1} parent=0 // pred_check_branch
    %20 = sbr.rel (0) target = $region21
  $region20: #{discriminator_forward.1} parent=0 // pred_region
    _
  $region21: #{discriminator_forward.1} parent=0 // pred_fallthru
    _
  %v22 = vld [vmem:[%s0] sm:$0xff]
  %v23 = vld [vmem:[%s0 + $0x8] sm:$0xff]
  %v24 = vld [vmem:[%s0 + $0x10] sm:$0xff]
  %v25 = vld [vmem:[%s0 + $0x18] sm:$0xff]
  %v26 = vld [vmem:[%s0 + $0x20] sm:$0xff]
  %v27 = vld [vmem:[%s0 + $0x28] sm:$0xff]
  %v28 = vld [vmem:[%s0 + $0x30] sm:$0xff]
  %v29 = vld [vmem:[%s0 + $0x38] sm:$0xff]
  %v30 = vld [vmem:[%s0 + $0x40] sm:$0xff]
  %v31 = vld [vmem:[%s0 + $0x48] sm:$0xff]
  %v32 = vld [vmem:[%s0 + $0x50] sm:$0xff]
  %v33 = vld [vmem:[%s0 + $0x58] sm:$0xff]
  %v34 = vld [vmem:[%s0 + $0x60] sm:$0xff]
  %v35 = vld [vmem:[%s0 + $0x68] sm:$0xff]
  %v36 = vld [vmem:[%s0 + $0x70] sm:$0xff]
  %v37 = vld [vmem:[%s0 + $0x78] sm:$0xff]
  %v38 = vld [vmem:[%s0 + $0x80] sm:$0xff]
  %v39 = vld [vmem:[%s0 + $0x88] sm:$0xff]
  %v40 = vld [vmem:[%s0 + $0x90] sm:$0xff]
  %v41 = vld [vmem:[%s0 + $0x98] sm:$0xff]
  %v42 = vld [vmem:[%s0 + $0xa0] sm:$0xff]
  %v43 = vld [vmem:[%s0 + $0xa8] sm:$0xff]
  %v44 = vld [vmem:[%s0 + $0xb0] sm:$0xff]
  %v45 = vld [vmem:[%s0 + $0xb8] sm:$0xff]
  %v46 = vld [vmem:[%s0 + $0xc0] sm:$0xff]
  %v47 = vld [vmem:[%s0 + $0xc8] sm:$0xff]
  %v48 = vld [vmem:[%s0 + $0xd0] sm:$0xff]
  %v49 = vld [vmem:[%s0 + $0xd8] sm:$0xff]
  %v50 = vld [vmem:[%s0 + $0xe0] sm:$0xff]
  %v51 = vld [vmem:[%s0 + $0xe8] sm:$0xff]
  %v52 = vld [vmem:[%s0 + $0xf0] sm:$0xff]
  %v53 = vld [vmem:[%s0 + $0xf8] sm:$0xff]
  %v54 = vld [vmem:[%s0 + $0x100] sm:$0xff]
  %v55 = vld [vmem:[%s0 + $0x108] sm:$0xff]
  %v56 = vld [vmem:[%s0 + $0x110] sm:$0xff]
  %v57 = vld [vmem:[%s0 + $0x118] sm:$0xff]
  %v58 = vld [vmem:[%s0 + $0x120] sm:$0xff]
  %v59 = vld [vmem:[%s0 + $0x128] sm:$0xff]
  %v60 = vld [vmem:[%s0 + $0x130] sm:$0xff]
  %v61 = vld [vmem:[%s0 + $0x138] sm:$0xff]
  %v62 = vld [vmem:[%s0 + $0x140] sm:$0xff]
  %v63 = vld [vmem:[%s0 + $0x148] sm:$0xff]
  %v64 = vld [vmem:[%s0 + $0x150] sm:$0xff]
  %v65 = vld [vmem:[%s0 + $0x158] sm:$0xff]
  %v66 = vld [vmem:[%s0 + $0x160] sm:$0xff]
  %v67 = vld [vmem:[%s0 + $0x168] sm:$0xff]
  %v68 = vld [vmem:[%s0 + $0x170] sm:$0xff]
  %v69 = vld [vmem:[%s0 + $0x178] sm:$0xff]
  %v70 = vld [vmem:[%s0 + $0x180] sm:$0xff]
  %v71 = vld [vmem:[%s0 + $0x188] sm:$0xff]
  %v72 = vld [vmem:[%s0 + $0x190] sm:$0xff]
  %v73 = vld [vmem:[%s0 + $0x198] sm:$0xff]
  %v74 = vld [vmem:[%s0 + $0x1a0] sm:$0xff]
  %v75 = vld [vmem:[%s0 + $0x1a8] sm:$0xff]
  %v76 = vld [vmem:[%s0 + $0x1b0] sm:$0xff]
  %v77 = vld [vmem:[%s0 + $0x1b8] sm:$0xff]
  %v78 = vld [vmem:[%s0 + $0x1c0] sm:$0xff]
  %v79 = vld [vmem:[%s0 + $0x1c8] sm:$0xff]
  %v80 = vld [vmem:[%s0 + $0x1d0] sm:$0xff]
  %v81 = vld [vmem:[%s0 + $0x1d8] sm:$0xff]
  %v82 = vld [vmem:[%s0 + $0x1e0] sm:$0xff]
  %v83 = vld [vmem:[%s0 + $0x1e8] sm:$0xff]
  %v84 = vld [vmem:[%s0 + $0x1f0] sm:$0xff]
  %v85 = vld [vmem:[%s0 + $0x1f8] sm:$0xff]
  %v86 = vld [vmem:[%s0 + $0x200] sm:$0xff]
  %v87 = vld [vmem:[%s0 + $0x208] sm:$0xff]
  %v88 = vld [vmem:[%s0 + $0x210] sm:$0xff]
  %v89 = vld [vmem:[%s0 + $0x218] sm:$0xff]
  %v90 = vld [vmem:[%s0 + $0x220] sm:$0xff]
  %v91 = vld [vmem:[%s0 + $0x228] sm:$0xff]
  %v92 = vld [vmem:[%s0 + $0x230] sm:$0xff]
  %v93 = vld [vmem:[%s0 + $0x238] sm:$0xff]
  %v94 = vld [vmem:[%s0 + $0x240] sm:$0xff]
  %v95 = vld [vmem:[%s0 + $0x248] sm:$0xff]
  %v96 = vld [vmem:[%s0 + $0x250] sm:$0xff]
  %v97 = vld [vmem:[%s0 + $0x258] sm:$0xff]
  %v98 = vld [vmem:[%s0 + $0x260] sm:$0xff]
  %v99 = vld [vmem:[%s0 + $0x268] sm:$0xff]
  %v100 = vld [vmem:[%s0 + $0x270] sm:$0xff]
  %v101 = vld [vmem:[%s0 + $0x278] sm:$0xff]
  %v102 = vld [vmem:[%s0 + $0x280] sm:$0xff]
  %v103 = vld [vmem:[%s0 + $0x288] sm:$0xff]
  %v104 = vld [vmem:[%s0 + $0x290] sm:$0xff]
  %v105 = vld [vmem:[%s0 + $0x298] sm:$0xff]
  %v106 = vld [vmem:[%s0 + $0x2a0] sm:$0xff]
  %v107 = vld [vmem:[%s0 + $0x2a8] sm:$0xff]
  %v108 = vld [vmem:[%s0 + $0x2b0] sm:$0xff]
  %v109 = vld [vmem:[%s0 + $0x2b8] sm:$0xff]
  %v110 = vld [vmem:[%s0 + $0x2c0] sm:$0xff]
  %v111 = vld [vmem:[%s0 + $0x2c8] sm:$0xff]
  %v112 = vld [vmem:[%s0 + $0x2d0] sm:$0xff]
  %v113 = vld [vmem:[%s0 + $0x2d8] sm:$0xff]
  %v114 = vld [vmem:[%s0 + $0x2e0] sm:$0xff]
  %v115 = vld [vmem:[%s0 + $0x2e8] sm:$0xff]
  %v116 = vld [vmem:[%s0 + $0x2f0] sm:$0xff]
  %v117 = vld [vmem:[%s0 + $0x2f8] sm:$0xff]
  %v118 = vld [vmem:[%s0 + $0x300] sm:$0xff]
  %v119 = vld [vmem:[%s0 + $0x308] sm:$0xff]
  %v120 = vld [vmem:[%s0 + $0x310] sm:$0xff]
  %v121 = vld [vmem:[%s0 + $0x318] sm:$0xff]
  %v122 = vld [vmem:[%s0 + $0x320] sm:$0xff]
  %v123 = vld [vmem:[%s0 + $0x328] sm:$0xff]
  %v124 = vld [vmem:[%s0 + $0x330] sm:$0xff]
  %v125 = vld [vmem:[%s0 + $0x338] sm:$0xff]
  %v126 = vld [vmem:[%s0 + $0x340] sm:$0xff]
  %v127 = vld [vmem:[%s0 + $0x348] sm:$0xff]
  %v128 = vld [vmem:[%s0 + $0x350] sm:$0xff]
  %v129 = vld [vmem:[%s0 + $0x358] sm:$0xff]
  %v130 = vld [vmem:[%s0 + $0x360] sm:$0xff]
  %v131 = vld [vmem:[%s0 + $0x368] sm:$0xff]
  %v132 = vld [vmem:[%s0 + $0x370] sm:$0xff]
  %v133 = vld [vmem:[%s0 + $0x378] sm:$0xff]
  %v134 = vld [vmem:[%s0 + $0x380] sm:$0xff]
  %v135 = vld [vmem:[%s0 + $0x388] sm:$0xff]
  %v136 = vld [vmem:[%s0 + $0x390] sm:$0xff]
  %v137 = vld [vmem:[%s0 + $0x398] sm:$0xff]
  %v138 = vld [vmem:[%s0 + $0x3a0] sm:$0xff]
  %v139 = vld [vmem:[%s0 + $0x3a8] sm:$0xff]
  %v140 = vld [vmem:[%s0 + $0x3b0] sm:$0xff]
  %v141 = vld [vmem:[%s0 + $0x3b8] sm:$0xff]
  %v142 = vld [vmem:[%s0 + $0x3c0] sm:$0xff]
  %v143 = vld [vmem:[%s0 + $0x3c8] sm:$0xff]
  %v144 = vld [vmem:[%s0 + $0x3d0] sm:$0xff]
  %v145 = vld [vmem:[%s0 + $0x3d8] sm:$0xff]
  %v146 = vld [vmem:[%s0 + $0x3e0] sm:$0xff]
  %v147 = vld [vmem:[%s0 + $0x3e8] sm:$0xff]
  %v148 = vld [vmem:[%s0 + $0x3f0] sm:$0xff]
  %v149 = vld [vmem:[%s0 + $0x3f8] sm:$0xff]
  %v150 = vld [vmem:[%s0 + $0x400] sm:$0xff]
  %v151 = vld [vmem:[%s0 + $0x408] sm:$0xff]
  %v152 = vld [vmem:[%s0 + $0x410] sm:$0xff]
  %v153 = vld [vmem:[%s0 + $0x418] sm:$0xff]
  %v154 = vld [vmem:[%s0 + $0x420] sm:$0xff]
  %v155 = vld [vmem:[%s0 + $0x428] sm:$0xff]
  %v156 = vld [vmem:[%s0 + $0x430] sm:$0xff]
  %v157 = vld [vmem:[%s0 + $0x438] sm:$0xff]
  %v158 = vld [vmem:[%s0 + $0x440] sm:$0xff]
  %v159 = vld [vmem:[%s0 + $0x448] sm:$0xff]
  %v160 = vld [vmem:[%s0 + $0x450] sm:$0xff]
  %v161 = vld [vmem:[%s0 + $0x458] sm:$0xff]
  %v162 = vld [vmem:[%s0 + $0x460] sm:$0xff]
  %v163 = vld [vmem:[%s0 + $0x468] sm:$0xff]
  %v164 = vld [vmem:[%s0 + $0x470] sm:$0xff]
  %v165 = vld [vmem:[%s0 + $0x478] sm:$0xff]
  %v166 = vld [vmem:[%s0 + $0x480] sm:$0xff]
  %v167 = vld [vmem:[%s0 + $0x488] sm:$0xff]
  %v168 = vld [vmem:[%s0 + $0x490] sm:$0xff]
  %v169 = vld [vmem:[%s0 + $0x498] sm:$0xff]
  %v170 = vld [vmem:[%s0 + $0x4a0] sm:$0xff]
  %v171 = vld [vmem:[%s0 + $0x4a8] sm:$0xff]
  %v172 = vld [vmem:[%s0 + $0x4b0] sm:$0xff]
  %v173 = vld [vmem:[%s0 + $0x4b8] sm:$0xff]
  %v174 = vld [vmem:[%s0 + $0x4c0] sm:$0xff]
  %v175 = vld [vmem:[%s0 + $0x4c8] sm:$0xff]
  %v176 = vld [vmem:[%s0 + $0x4d0] sm:$0xff]
  %v177 = vld [vmem:[%s0 + $0x4d8] sm:$0xff]
  %v178 = vld [vmem:[%s0 + $0x4e0] sm:$0xff]
  %v179 = vld [vmem:[%s0 + $0x4e8] sm:$0xff]
  %v180 = vld [vmem:[%s0 + $0x4f0] sm:$0xff]
  %v181 = vld [vmem:[%s0 + $0x4f8] sm:$0xff]
  %v182 = vld [vmem:[%s0 + $0x500] sm:$0xff]
  %v183 = vld [vmem:[%s0 + $0x508] sm:$0xff]
  %v184 = vld [vmem:[%s0 + $0x510] sm:$0xff]
  %v185 = vld [vmem:[%s0 + $0x518] sm:$0xff]
  %v186 = vld [vmem:[%s0 + $0x520] sm:$0xff]
  %v187 = vld [vmem:[%s0 + $0x528] sm:$0xff]
  %v188 = vld [vmem:[%s0 + $0x530] sm:$0xff]
  %v189 = vld [vmem:[%s0 + $0x538] sm:$0xff]
  %v190 = vld [vmem:[%s0 + $0x540] sm:$0xff]
  %v191 = vld [vmem:[%s0 + $0x548] sm:$0xff]
  %v192 = vld [vmem:[%s0 + $0x550] sm:$0xff]
  %v193 = vld [vmem:[%s0 + $0x558] sm:$0xff]
  %v194 = vld [vmem:[%s0 + $0x560] sm:$0xff]
  %v195 = vld [vmem:[%s0 + $0x568] sm:$0xff]
  %v196 = vld [vmem:[%s0 + $0x570] sm:$0xff]
  %v197 = vld [vmem:[%s0 + $0x578] sm:$0xff]
  %v198 = vld [vmem:[%s0 + $0x580] sm:$0xff]
  %v199 = vld [vmem:[%s0 + $0x588] sm:$0xff]
  %v200 = vld [vmem:[%s0 + $0x590] sm:$0xff]
  %v201 = vld [vmem:[%s0 + $0x598] sm:$0xff]
  %v202 = vld [vmem:[%s0 + $0x5a0] sm:$0xff]
  %v203 = vld [vmem:[%s0 + $0x5a8] sm:$0xff]
  %v204 = vld [vmem:[%s0 + $0x5b0] sm:$0xff]
  %v205 = vld [vmem:[%s0 + $0x5b8] sm:$0xff]
  %v206 = vld [vmem:[%s0 + $0x5c0] sm:$0xff]
  %v207 = vld [vmem:[%s0 + $0x5c8] sm:$0xff]
  %v208 = vld [vmem:[%s0 + $0x5d0] sm:$0xff]
  %v209 = vld [vmem:[%s0 + $0x5d8] sm:$0xff]
  %v210 = vld [vmem:[%s0 + $0x5e0] sm:$0xff]
  %v211 = vld [vmem:[%s0 + $0x5e8] sm:$0xff]
  %v212 = vld [vmem:[%s0 + $0x5f0] sm:$0xff]
  %v213 = vld [vmem:[%s0 + $0x5f8] sm:$0xff]
  %v214 = vld [vmem:[%s0 + $0x600] sm:$0xff]
  %v215 = vld [vmem:[%s0 + $0x608] sm:$0xff]
  %v216 = vld [vmem:[%s0 + $0x610] sm:$0xff]
  %v217 = vld [vmem:[%s0 + $0x618] sm:$0xff]
  %v218 = vld [vmem:[%s0 + $0x620] sm:$0xff]
  %v219 = vld [vmem:[%s0 + $0x628] sm:$0xff]
  %v220 = vld [vmem:[%s0 + $0x630] sm:$0xff]
  %v221 = vld [vmem:[%s0 + $0x638] sm:$0xff]
  %v222 = vld [vmem:[%s0 + $0x640] sm:$0xff]
  %v223 = vld [vmem:[%s0 + $0x648] sm:$0xff]
  %v224 = vld [vmem:[%s0 + $0x650] sm:$0xff]
  %v225 = vld [vmem:[%s0 + $0x658] sm:$0xff]
  %v226 = vld [vmem:[%s0 + $0x660] sm:$0xff]
  %v227 = vld [vmem:[%s0 + $0x668] sm:$0xff]
  %v228 = vld [vmem:[%s0 + $0x670] sm:$0xff]
  %v229 = vld [vmem:[%s0 + $0x678] sm:$0xff]
  %v230 = vld [vmem:[%s0 + $0x680] sm:$0xff]
  %v231 = vld [vmem:[%s0 + $0x688] sm:$0xff]
  %v232 = vld [vmem:[%s0 + $0x690] sm:$0xff]
  %v233 = vld [vmem:[%s0 + $0x698] sm:$0xff]
  %v234 = vld [vmem:[%s0 + $0x6a0] sm:$0xff]
  %v235 = vld [vmem:[%s0 + $0x6a8] sm:$0xff]
  %v236 = vld [vmem:[%s0 + $0x6b0] sm:$0xff]
  %v237 = vld [vmem:[%s0 + $0x6b8] sm:$0xff]
  %v238 = vld [vmem:[%s0 + $0x6c0] sm:$0xff]
  %v239 = vld [vmem:[%s0 + $0x6c8] sm:$0xff]
  %v240 = vld [vmem:[%s0 + $0x6d0] sm:$0xff]
  %v241 = vld [vmem:[%s0 + $0x6d8] sm:$0xff]
  %v242 = vld [vmem:[%s0 + $0x6e0] sm:$0xff]
  %v243 = vld [vmem:[%s0 + $0x6e8] sm:$0xff]
  %v244 = vld [vmem:[%s0 + $0x6f0] sm:$0xff]
  %v245 = vld [vmem:[%s0 + $0x6f8] sm:$0xff]
  %v246 = vpack.c.bf16 %v29, %v22
  %v247 = vpack.c.bf16 %v30, %v23
  %v248 = vpack.c.bf16 %v31, %v24
  %v249 = vpack.c.bf16 %v32, %v25
  %v250 = vpack.c.bf16 %v33, %v26
  %v251 = vpack.c.bf16 %v34, %v27
  %v252 = vpack.c.bf16 %v35, %v28
  %v253 = vpack.c.bf16 %v43, %v36
  %v254 = vpack.c.bf16 %v44, %v37
  %v255 = vpack.c.bf16 %v45, %v38
  %v256 = vpack.c.bf16 %v46, %v39
  %v257 = vpack.c.bf16 %v47, %v40
  %v258 = vpack.c.bf16 %v48, %v41
  %v259 = vpack.c.bf16 %v49, %v42
  %v260 = vpack.c.bf16 %v57, %v50
  %v261 = vpack.c.bf16 %v58, %v51
  %v262 = vpack.c.bf16 %v59, %v52
  %v263 = vpack.c.bf16 %v60, %v53
  %v264 = vpack.c.bf16 %v61, %v54
  %v265 = vpack.c.bf16 %v62, %v55
  %v266 = vpack.c.bf16 %v63, %v56
  %v267 = vpack.c.bf16 %v71, %v64
  %v268 = vpack.c.bf16 %v72, %v65
  %v269 = vpack.c.bf16 %v73, %v66
  %v270 = vpack.c.bf16 %v74, %v67
  %v271 = vpack.c.bf16 %v75, %v68
  %v272 = vpack.c.bf16 %v76, %v69
  %v273 = vpack.c.bf16 %v77, %v70
  %v274 = vpack.c.bf16 %v85, %v78
  %v275 = vpack.c.bf16 %v86, %v79
  %v276 = vpack.c.bf16 %v87, %v80
  %v277 = vpack.c.bf16 %v88, %v81
  %v278 = vpack.c.bf16 %v89, %v82
  %v279 = vpack.c.bf16 %v90, %v83
  %v280 = vpack.c.bf16 %v91, %v84
  %v281 = vpack.c.bf16 %v99, %v92
  %v282 = vpack.c.bf16 %v100, %v93
  %v283 = vpack.c.bf16 %v101, %v94
  %v284 = vpack.c.bf16 %v102, %v95
  %v285 = vpack.c.bf16 %v103, %v96
  %v286 = vpack.c.bf16 %v104, %v97
  %v287 = vpack.c.bf16 %v105, %v98
  %v288 = vpack.c.bf16 %v113, %v106
  %v289 = vpack.c.bf16 %v114, %v107
  %v290 = vpack.c.bf16 %v115, %v108
  %v291 = vpack.c.bf16 %v116, %v109
  %v292 = vpack.c.bf16 %v117, %v110
  %v293 = vpack.c.bf16 %v118, %v111
  %v294 = vpack.c.bf16 %v119, %v112
  %v295 = vpack.c.bf16 %v127, %v120
  %v296 = vpack.c.bf16 %v128, %v121
  %v297 = vpack.c.bf16 %v129, %v122
  %v298 = vpack.c.bf16 %v130, %v123
  %v299 = vpack.c.bf16 %v131, %v124
  %v300 = vpack.c.bf16 %v132, %v125
  %v301 = vpack.c.bf16 %v133, %v126
  %v302 = vpack.c.bf16 %v141, %v134
  %v303 = vpack.c.bf16 %v142, %v135
  %v304 = vpack.c.bf16 %v143, %v136
  %v305 = vpack.c.bf16 %v144, %v137
  %v306 = vpack.c.bf16 %v145, %v138
  %v307 = vpack.c.bf16 %v146, %v139
  %v308 = vpack.c.bf16 %v147, %v140
  %v309 = vpack.c.bf16 %v155, %v148
  %v310 = vpack.c.bf16 %v156, %v149
  %v311 = vpack.c.bf16 %v157, %v150
  %v312 = vpack.c.bf16 %v158, %v151
  %v313 = vpack.c.bf16 %v159, %v152
  %v314 = vpack.c.bf16 %v160, %v153
  %v315 = vpack.c.bf16 %v161, %v154
  %v316 = vpack.c.bf16 %v169, %v162
  %v317 = vpack.c.bf16 %v170, %v163
  %v318 = vpack.c.bf16 %v171, %v164
  %v319 = vpack.c.bf16 %v172, %v165
  %v320 = vpack.c.bf16 %v173, %v166
  %v321 = vpack.c.bf16 %v174, %v167
  %v322 = vpack.c.bf16 %v175, %v168
  %v323 = vpack.c.bf16 %v183, %v176
  %v324 = vpack.c.bf16 %v184, %v177
  %v325 = vpack.c.bf16 %v185, %v178
  %v326 = vpack.c.bf16 %v186, %v179
  %v327 = vpack.c.bf16 %v187, %v180
  %v328 = vpack.c.bf16 %v188, %v181
  %v329 = vpack.c.bf16 %v189, %v182
  %v330 = vpack.c.bf16 %v197, %v190
  %v331 = vpack.c.bf16 %v198, %v191
  %v332 = vpack.c.bf16 %v199, %v192
  %v333 = vpack.c.bf16 %v200, %v193
  %v334 = vpack.c.bf16 %v201, %v194
  %v335 = vpack.c.bf16 %v202, %v195
  %v336 = vpack.c.bf16 %v203, %v196
  %v337 = vpack.c.bf16 %v211, %v204
  %v338 = vpack.c.bf16 %v212, %v205
  %v339 = vpack.c.bf16 %v213, %v206
  %v340 = vpack.c.bf16 %v214, %v207
  %v341 = vpack.c.bf16 %v215, %v208
  %v342 = vpack.c.bf16 %v216, %v209
  %v343 = vpack.c.bf16 %v217, %v210
  %v344 = vpack.c.bf16 %v225, %v218
  %v345 = vpack.c.bf16 %v226, %v219
  %v346 = vpack.c.bf16 %v227, %v220
  %v347 = vpack.c.bf16 %v228, %v221
  %v348 = vpack.c.bf16 %v229, %v222
  %v349 = vpack.c.bf16 %v230, %v223
  %v350 = vpack.c.bf16 %v231, %v224
  %v351 = vpack.c.bf16 %v239, %v232
  %v352 = vpack.c.bf16 %v240, %v233
  %v353 = vpack.c.bf16 %v241, %v234
  %v354 = vpack.c.bf16 %v242, %v235
  %v355 = vpack.c.bf16 %v243, %v236
  %v356 = vpack.c.bf16 %v244, %v237
  %v357 = vpack.c.bf16 %v245, %v238
  %v358 = vld [vmem:[%s1] sm:$0xf]
  %v359 = vld [vmem:[%s1 + $0x4] sm:$0xf]
  %v360 = vld [vmem:[%s1 + $0x8] sm:$0xf]
  %v361 = vld [vmem:[%s1 + $0xc] sm:$0xf]
  %v362 = vld [vmem:[%s1 + $0x10] sm:$0xf]
  %v363 = vld [vmem:[%s1 + $0x14] sm:$0xf]
  %v364 = vld [vmem:[%s1 + $0x18] sm:$0xf]
  %v365 = vld [vmem:[%s1 + $0x1c] sm:$0xf]
  %v366 = vld [vmem:[%s1 + $0x20] sm:$0xf]
  %v367 = vld [vmem:[%s1 + $0x24] sm:$0xf]
  %v368 = vld [vmem:[%s1 + $0x28] sm:$0xf]
  %v369 = vld [vmem:[%s1 + $0x2c] sm:$0xf]
  %v370 = vld [vmem:[%s1 + $0x30] sm:$0xf]
  %v371 = vld [vmem:[%s1 + $0x34] sm:$0xf]
  %v372 = vld [vmem:[%s1 + $0x38] sm:$0xf]
  %v373 = vld [vmem:[%s1 + $0x3c] sm:$0xf]
  %v374 = vld [vmem:[%s1 + $0x40] sm:$0xf]
  %v375 = vld [vmem:[%s1 + $0x44] sm:$0xf]
  %v376 = vld [vmem:[%s1 + $0x48] sm:$0xf]
  %v377 = vld [vmem:[%s1 + $0x4c] sm:$0xf]
  %v378 = vld [vmem:[%s1 + $0x50] sm:$0xf]
  %v379 = vld [vmem:[%s1 + $0x54] sm:$0xf]
  %v380 = vld [vmem:[%s1 + $0x58] sm:$0xf]
  %v381 = vld [vmem:[%s1 + $0x5c] sm:$0xf]
  %v382 = vld [vmem:[%s1 + $0x60] sm:$0xf]
  %v383 = vld [vmem:[%s1 + $0x64] sm:$0xf]
  %v384 = vld [vmem:[%s1 + $0x68] sm:$0xf]
  %v385 = vld [vmem:[%s1 + $0x6c] sm:$0xf]
  %v386 = vld [vmem:[%s1 + $0x70] sm:$0xf]
  %v387 = vld [vmem:[%s1 + $0x74] sm:$0xf]
  %v388 = vld [vmem:[%s1 + $0x78] sm:$0xf]
  %v389 = vld [vmem:[%s1 + $0x7c] sm:$0xf]
  %v390 = vld [vmem:[%s1 + $0x80] sm:$0xf]
  %v391 = vld [vmem:[%s1 + $0x84] sm:$0xf]
  %v392 = vld [vmem:[%s1 + $0x88] sm:$0xf]
  %v393 = vld [vmem:[%s1 + $0x8c] sm:$0xf]
  %v394 = vld [vmem:[%s1 + $0x90] sm:$0xf]
  %v395 = vld [vmem:[%s1 + $0x94] sm:$0xf]
  %v396 = vld [vmem:[%s1 + $0x98] sm:$0xf]
  %v397 = vld [vmem:[%s1 + $0x9c] sm:$0xf]
  %v398 = vld [vmem:[%s1 + $0xa0] sm:$0xf]
  %v399 = vld [vmem:[%s1 + $0xa4] sm:$0xf]
  %v400 = vld [vmem:[%s1 + $0xa8] sm:$0xf]
  %v401 = vld [vmem:[%s1 + $0xac] sm:$0xf]
  %v402 = vld [vmem:[%s1 + $0xb0] sm:$0xf]
  %v403 = vld [vmem:[%s1 + $0xb4] sm:$0xf]
  %v404 = vld [vmem:[%s1 + $0xb8] sm:$0xf]
  %v405 = vld [vmem:[%s1 + $0xbc] sm:$0xf]
  %v406 = vld [vmem:[%s1 + $0xc0] sm:$0xf]
  %v407 = vld [vmem:[%s1 + $0xc4] sm:$0xf]
  %v408 = vld [vmem:[%s1 + $0xc8] sm:$0xf]
  %v409 = vld [vmem:[%s1 + $0xcc] sm:$0xf]
  %v410 = vld [vmem:[%s1 + $0xd0] sm:$0xf]
  %v411 = vld [vmem:[%s1 + $0xd4] sm:$0xf]
  %v412 = vld [vmem:[%s1 + $0xd8] sm:$0xf]
  %v413 = vld [vmem:[%s1 + $0xdc] sm:$0xf]
  %v414 = vld [vmem:[%s1 + $0xe0] sm:$0xf]
  %v415 = vld [vmem:[%s1 + $0xe4] sm:$0xf]
  %v416 = vld [vmem:[%s1 + $0xe8] sm:$0xf]
  %v417 = vld [vmem:[%s1 + $0xec] sm:$0xf]
  %v418 = vld [vmem:[%s1 + $0xf0] sm:$0xf]
  %v419 = vld [vmem:[%s1 + $0xf4] sm:$0xf]
  %v420 = vld [vmem:[%s1 + $0xf8] sm:$0xf]
  %v421 = vld [vmem:[%s1 + $0xfc] sm:$0xf]
  %v422 = vld [vmem:[%s1 + $0x100] sm:$0xf]
  %v423 = vld [vmem:[%s1 + $0x104] sm:$0xf]
  %v424 = vld [vmem:[%s1 + $0x108] sm:$0xf]
  %v425 = vld [vmem:[%s1 + $0x10c] sm:$0xf]
  %v426 = vld [vmem:[%s1 + $0x110] sm:$0xf]
  %v427 = vld [vmem:[%s1 + $0x114] sm:$0xf]
  %v428 = vld [vmem:[%s1 + $0x118] sm:$0xf]
  %v429 = vld [vmem:[%s1 + $0x11c] sm:$0xf]
  %v430 = vld [vmem:[%s1 + $0x120] sm:$0xf]
  %v431 = vld [vmem:[%s1 + $0x124] sm:$0xf]
  %v432 = vld [vmem:[%s1 + $0x128] sm:$0xf]
  %v433 = vld [vmem:[%s1 + $0x12c] sm:$0xf]
  %v434 = vld [vmem:[%s1 + $0x130] sm:$0xf]
  %v435 = vld [vmem:[%s1 + $0x134] sm:$0xf]
  %v436 = vld [vmem:[%s1 + $0x138] sm:$0xf]
  %v437 = vld [vmem:[%s1 + $0x13c] sm:$0xf]
  %v438 = vld [vmem:[%s1 + $0x140] sm:$0xf]
  %v439 = vld [vmem:[%s1 + $0x144] sm:$0xf]
  %v440 = vld [vmem:[%s1 + $0x148] sm:$0xf]
  %v441 = vld [vmem:[%s1 + $0x14c] sm:$0xf]
  %v442 = vld [vmem:[%s1 + $0x150] sm:$0xf]
  %v443 = vld [vmem:[%s1 + $0x154] sm:$0xf]
  %v444 = vld [vmem:[%s1 + $0x158] sm:$0xf]
  %v445 = vld [vmem:[%s1 + $0x15c] sm:$0xf]
  %v446 = vld [vmem:[%s1 + $0x160] sm:$0xf]
  %v447 = vld [vmem:[%s1 + $0x164] sm:$0xf]
  %v448 = vld [vmem:[%s1 + $0x168] sm:$0xf]
  %v449 = vld [vmem:[%s1 + $0x16c] sm:$0xf]
  %v450 = vld [vmem:[%s1 + $0x170] sm:$0xf]
  %v451 = vld [vmem:[%s1 + $0x174] sm:$0xf]
  %v452 = vld [vmem:[%s1 + $0x178] sm:$0xf]
  %v453 = vld [vmem:[%s1 + $0x17c] sm:$0xf]
  %v454 = vld [vmem:[%s1 + $0x180] sm:$0xf]
  %v455 = vld [vmem:[%s1 + $0x184] sm:$0xf]
  %v456 = vld [vmem:[%s2] sm:$0x1]
  %v458 = vperm.slane %v456, 0
  %v558 = vunpack.c.l.b16 %v358
  %v559 = vunpack.c.l.b16 %v359
  %v560 = vunpack.c.l.b16 %v360
  %v561 = vunpack.c.l.b16 %v361
  %v562 = vunpack.c.l.b16 %v362
  %v563 = vunpack.c.l.b16 %v363
  %v564 = vunpack.c.l.b16 %v364
  %v565 = vunpack.c.l.b16 %v365
  %v566 = vunpack.c.l.b16 %v366
  %v567 = vunpack.c.l.b16 %v367
  %v568 = vunpack.c.l.b16 %v368
  %v569 = vunpack.c.l.b16 %v369
  %v570 = vunpack.c.l.b16 %v370
  %v571 = vunpack.c.l.b16 %v371
  %v572 = vunpack.c.l.b16 %v372
  %v573 = vunpack.c.l.b16 %v373
  %v574 = vunpack.c.l.b16 %v374
  %v575 = vunpack.c.l.b16 %v375
  %v576 = vunpack.c.l.b16 %v376
  %v577 = vunpack.c.l.b16 %v377
  %v578 = vunpack.c.l.b16 %v378
  %v579 = vunpack.c.l.b16 %v379
  %v580 = vunpack.c.l.b16 %v380
  %v581 = vunpack.c.l.b16 %v381
  %v582 = vunpack.c.l.b16 %v382
  %v583 = vunpack.c.l.b16 %v383
  %v584 = vunpack.c.l.b16 %v384
  %v585 = vunpack.c.l.b16 %v385
  %v586 = vunpack.c.l.b16 %v386
  %v587 = vunpack.c.l.b16 %v387
  %v588 = vunpack.c.l.b16 %v388
  %v589 = vunpack.c.l.b16 %v389
  %v590 = vunpack.c.l.b16 %v390
  %v591 = vunpack.c.l.b16 %v391
  %v592 = vunpack.c.l.b16 %v392
  %v593 = vunpack.c.l.b16 %v393
  %v594 = vunpack.c.l.b16 %v394
  %v595 = vunpack.c.l.b16 %v395
  %v596 = vunpack.c.l.b16 %v396
  %v597 = vunpack.c.l.b16 %v397
  %v598 = vunpack.c.l.b16 %v398
  %v599 = vunpack.c.l.b16 %v399
  %v600 = vunpack.c.l.b16 %v400
  %v601 = vunpack.c.l.b16 %v401
  %v602 = vunpack.c.l.b16 %v402
  %v603 = vunpack.c.l.b16 %v403
  %v604 = vunpack.c.l.b16 %v404
  %v605 = vunpack.c.l.b16 %v405
  %v606 = vunpack.c.l.b16 %v406
  %v607 = vunpack.c.l.b16 %v407
  %v608 = vunpack.c.l.b16 %v408
  %v609 = vunpack.c.l.b16 %v409
  %v610 = vunpack.c.l.b16 %v410
  %v611 = vunpack.c.l.b16 %v411
  %v612 = vunpack.c.l.b16 %v412
  %v613 = vunpack.c.l.b16 %v413
  %v614 = vunpack.c.l.b16 %v414
  %v615 = vunpack.c.l.b16 %v415
  %v616 = vunpack.c.l.b16 %v416
  %v617 = vunpack.c.l.b16 %v417
  %v618 = vunpack.c.l.b16 %v418
  %v619 = vunpack.c.l.b16 %v419
  %v620 = vunpack.c.l.b16 %v420
  %v621 = vunpack.c.l.b16 %v421
  %v622 = vunpack.c.l.b16 %v422
  %v623 = vunpack.c.l.b16 %v423
  %v624 = vunpack.c.l.b16 %v424
  %v625 = vunpack.c.l.b16 %v425
  %v626 = vunpack.c.l.b16 %v426
  %v627 = vunpack.c.l.b16 %v427
  %v628 = vunpack.c.l.b16 %v428
  %v629 = vunpack.c.l.b16 %v429
  %v630 = vunpack.c.l.b16 %v430
  %v631 = vunpack.c.l.b16 %v431
  %v632 = vunpack.c.l.b16 %v432
  %v633 = vunpack.c.l.b16 %v433
  %v634 = vunpack.c.l.b16 %v434
  %v635 = vunpack.c.l.b16 %v435
  %v636 = vunpack.c.l.b16 %v436
  %v637 = vunpack.c.l.b16 %v437
  %v638 = vunpack.c.l.b16 %v438
  %v639 = vunpack.c.l.b16 %v439
  %v640 = vunpack.c.l.b16 %v440
  %v641 = vunpack.c.l.b16 %v441
  %v642 = vunpack.c.l.b16 %v442
  %v643 = vunpack.c.l.b16 %v443
  %v644 = vunpack.c.l.b16 %v444
  %v645 = vunpack.c.l.b16 %v445
  %v646 = vunpack.c.l.b16 %v446
  %v647 = vunpack.c.l.b16 %v447
  %v648 = vunpack.c.l.b16 %v448
  %v649 = vunpack.c.l.b16 %v449
  %v650 = vunpack.c.l.b16 %v450
  %v651 = vunpack.c.l.b16 %v451
  %v652 = vunpack.c.l.b16 %v452
  %v653 = vunpack.c.l.b16 %v453
  %v654 = vunpack.c.l.b16 %v454
  %v655 = vunpack.c.l.b16 %v455
  %v656 = vpack.c.b16 %v559, %v558
  %v657 = vpack.c.b16 %v561, %v560
  %v658 = vpack.c.b16 %v563, %v562
  %v659 = vpack.c.b16 %v565, %v564
  %v660 = vpack.c.b16 %v567, %v566
  %v661 = vpack.c.b16 %v569, %v568
  %v662 = vpack.c.b16 %v571, %v570
  %v663 = vpack.c.b16 %v573, %v572
  %v664 = vpack.c.b16 %v575, %v574
  %v665 = vpack.c.b16 %v577, %v576
  %v666 = vpack.c.b16 %v579, %v578
  %v667 = vpack.c.b16 %v581, %v580
  %v668 = vpack.c.b16 %v583, %v582
  %v669 = vpack.c.b16 %v585, %v584
  %v670 = vpack.c.b16 %v587, %v586
  %v671 = vpack.c.b16 %v589, %v588
  %v672 = vpack.c.b16 %v591, %v590
  %v673 = vpack.c.b16 %v593, %v592
  %v674 = vpack.c.b16 %v595, %v594
  %v675 = vpack.c.b16 %v597, %v596
  %v676 = vpack.c.b16 %v599, %v598
  %v677 = vpack.c.b16 %v601, %v600
  %v678 = vpack.c.b16 %v603, %v602
  %v679 = vpack.c.b16 %v605, %v604
  %v680 = vpack.c.b16 %v607, %v606
  %v681 = vpack.c.b16 %v609, %v608
  %v682 = vpack.c.b16 %v611, %v610
  %v683 = vpack.c.b16 %v613, %v612
  %v684 = vpack.c.b16 %v615, %v614
  %v685 = vpack.c.b16 %v617, %v616
  %v686 = vpack.c.b16 %v619, %v618
  %v687 = vpack.c.b16 %v621, %v620
  %v688 = vpack.c.b16 %v623, %v622
  %v689 = vpack.c.b16 %v625, %v624
  %v690 = vpack.c.b16 %v627, %v626
  %v691 = vpack.c.b16 %v629, %v628
  %v692 = vpack.c.b16 %v631, %v630
  %v693 = vpack.c.b16 %v633, %v632
  %v694 = vpack.c.b16 %v635, %v634
  %v695 = vpack.c.b16 %v637, %v636
  %v696 = vpack.c.b16 %v639, %v638
  %v697 = vpack.c.b16 %v641, %v640
  %v698 = vpack.c.b16 %v643, %v642
  %v699 = vpack.c.b16 %v645, %v644
  %v700 = vpack.c.b16 %v647, %v646
  %v701 = vpack.c.b16 %v649, %v648
  %v702 = vpack.c.b16 %v651, %v650
  %v703 = vpack.c.b16 %v653, %v652
  %v704 = vpack.c.b16 %v655, %v654
  %vm754 = vcmask 130048
  %v756 = vsel %vm754, %v252, 0
  %v759 = vsel %vm754, %v259, 0
  %v762 = vsel %vm754, %v266, 0
  %v765 = vsel %vm754, %v273, 0
  %v768 = vsel %vm754, %v280, 0
  %v771 = vsel %vm754, %v287, 0
  %v774 = vsel %vm754, %v294, 0
  %v777 = vsel %vm754, %v301, 0
  %v780 = vsel %vm754, %v308, 0
  %v783 = vsel %vm754, %v315, 0
  %v786 = vsel %vm754, %v322, 0
  %v789 = vsel %vm754, %v329, 0
  %v792 = vsel %vm754, %v336, 0
  %v795 = vsel %vm754, %v343, 0
  %v798 = vsel %vm754, %v350, 0
  %v801 = vsel %vm754, %v357, 0
  %803 = vmatpush.bf16.msra.mxu0 %v663
  %804 = vmatpush.bf16.msra.mxu0 %v662
  %805 = vmatpush.bf16.msra.mxu0 %v661
  %806 = vmatpush.bf16.msra.mxu0 %v660
  %807 = vmatpush.bf16.msra.mxu0 %v659
  %808 = vmatpush.bf16.msra.mxu0 %v658
  %809 = vmatpush.bf16.msra.mxu0 %v657
  %810 = vmatpush.bf16.msra.mxu0 %v656
  %811 = vmatmul.bf16.gmra.mxu0 %v246
  %v812 = vpop.f32.mrf.mxu0
  %v813 = vadd.f32 %v458, %v812
  %v814 = vpop.f32.mrf.mxu0
  %v815 = vadd.f32 %v458, %v814
  %816 = vmatmul.bf16.gmra.mxu0 %v253
  %v817 = vpop.f32.mrf.mxu0
  %v818 = vadd.f32 %v458, %v817
  %v819 = vpop.f32.mrf.mxu0
  %v820 = vadd.f32 %v458, %v819
  %821 = vmatmul.bf16.gmra.mxu0 %v260
  %v822 = vpop.f32.mrf.mxu0
  %v823 = vadd.f32 %v458, %v822
  %v824 = vpop.f32.mrf.mxu0
  %v825 = vadd.f32 %v458, %v824
  %826 = vmatmul.bf16.gmra.mxu0 %v267
  %v827 = vpop.f32.mrf.mxu0
  %v828 = vadd.f32 %v458, %v827
  %v829 = vpop.f32.mrf.mxu0
  %v830 = vadd.f32 %v458, %v829
  %831 = vmatmul.bf16.gmra.mxu0 %v274
  %v832 = vpop.f32.mrf.mxu0
  %v833 = vadd.f32 %v458, %v832
  %v834 = vpop.f32.mrf.mxu0
  %v835 = vadd.f32 %v458, %v834
  %836 = vmatmul.bf16.gmra.mxu0 %v281
  %v837 = vpop.f32.mrf.mxu0
  %v838 = vadd.f32 %v458, %v837
  %v839 = vpop.f32.mrf.mxu0
  %v840 = vadd.f32 %v458, %v839
  %841 = vmatmul.bf16.gmra.mxu0 %v288
  %v842 = vpop.f32.mrf.mxu0
  %v843 = vadd.f32 %v458, %v842
  %v844 = vpop.f32.mrf.mxu0
  %v845 = vadd.f32 %v458, %v844
  %846 = vmatmul.bf16.gmra.mxu0 %v295
  %v847 = vpop.f32.mrf.mxu0
  %v848 = vadd.f32 %v458, %v847
  %v849 = vpop.f32.mrf.mxu0
  %v850 = vadd.f32 %v458, %v849
  %851 = vmatmul.bf16.gmra.mxu0 %v302
  %v852 = vpop.f32.mrf.mxu0
  %v853 = vadd.f32 %v458, %v852
  %v854 = vpop.f32.mrf.mxu0
  %v855 = vadd.f32 %v458, %v854
  %856 = vmatmul.bf16.gmra.mxu0 %v309
  %v857 = vpop.f32.mrf.mxu0
  %v858 = vadd.f32 %v458, %v857
  %v859 = vpop.f32.mrf.mxu0
  %v860 = vadd.f32 %v458, %v859
  %861 = vmatmul.bf16.gmra.mxu0 %v316
  %v862 = vpop.f32.mrf.mxu0
  %v863 = vadd.f32 %v458, %v862
  %v864 = vpop.f32.mrf.mxu0
  %v865 = vadd.f32 %v458, %v864
  %866 = vmatmul.bf16.gmra.mxu0 %v323
  %v867 = vpop.f32.mrf.mxu0
  %v868 = vadd.f32 %v458, %v867
  %v869 = vpop.f32.mrf.mxu0
  %v870 = vadd.f32 %v458, %v869
  %871 = vmatmul.bf16.gmra.mxu0 %v330
  %v872 = vpop.f32.mrf.mxu0
  %v873 = vadd.f32 %v458, %v872
  %v874 = vpop.f32.mrf.mxu0
  %v875 = vadd.f32 %v458, %v874
  %876 = vmatmul.bf16.gmra.mxu0 %v337
  %v877 = vpop.f32.mrf.mxu0
  %v878 = vadd.f32 %v458, %v877
  %v879 = vpop.f32.mrf.mxu0
  %v880 = vadd.f32 %v458, %v879
  %881 = vmatmul.bf16.gmra.mxu0 %v344
  %v882 = vpop.f32.mrf.mxu0
  %v883 = vadd.f32 %v458, %v882
  %v884 = vpop.f32.mrf.mxu0
  %v885 = vadd.f32 %v458, %v884
  %886 = vmatmul.bf16.gmra.mxu0 %v351
  %v887 = vpop.f32.mrf.mxu0
  %v888 = vadd.f32 %v458, %v887
  %v889 = vpop.f32.mrf.mxu0
  %v890 = vadd.f32 %v458, %v889
  %891 = vdwg.mxu0
  %892 = vmatpush.bf16.msra.mxu0 %v671
  %893 = vmatpush.bf16.msra.mxu0 %v670
  %894 = vmatpush.bf16.msra.mxu0 %v669
  %895 = vmatpush.bf16.msra.mxu0 %v668
  %896 = vmatpush.bf16.msra.mxu0 %v667
  %897 = vmatpush.bf16.msra.mxu0 %v666
  %898 = vmatpush.bf16.msra.mxu0 %v665
  %899 = vmatpush.bf16.msra.mxu0 %v664
  %900 = vmatmul.bf16.gmra.mxu0 %v247
  %v901 = vpop.f32.mrf.mxu0
  %v902 = vadd.f32 %v813, %v901
  %v903 = vpop.f32.mrf.mxu0
  %v904 = vadd.f32 %v815, %v903
  %905 = vmatmul.bf16.gmra.mxu0 %v254
  %v906 = vpop.f32.mrf.mxu0
  %v907 = vadd.f32 %v818, %v906
  %v908 = vpop.f32.mrf.mxu0
  %v909 = vadd.f32 %v820, %v908
  %910 = vmatmul.bf16.gmra.mxu0 %v261
  %v911 = vpop.f32.mrf.mxu0
  %v912 = vadd.f32 %v823, %v911
  %v913 = vpop.f32.mrf.mxu0
  %v914 = vadd.f32 %v825, %v913
  %915 = vmatmul.bf16.gmra.mxu0 %v268
  %v916 = vpop.f32.mrf.mxu0
  %v917 = vadd.f32 %v828, %v916
  %v918 = vpop.f32.mrf.mxu0
  %v919 = vadd.f32 %v830, %v918
  %920 = vmatmul.bf16.gmra.mxu0 %v275
  %v921 = vpop.f32.mrf.mxu0
  %v922 = vadd.f32 %v833, %v921
  %v923 = vpop.f32.mrf.mxu0
  %v924 = vadd.f32 %v835, %v923
  %925 = vmatmul.bf16.gmra.mxu0 %v282
  %v926 = vpop.f32.mrf.mxu0
  %v927 = vadd.f32 %v838, %v926
  %v928 = vpop.f32.mrf.mxu0
  %v929 = vadd.f32 %v840, %v928
  %930 = vmatmul.bf16.gmra.mxu0 %v289
  %v931 = vpop.f32.mrf.mxu0
  %v932 = vadd.f32 %v843, %v931
  %v933 = vpop.f32.mrf.mxu0
  %v934 = vadd.f32 %v845, %v933
  %935 = vmatmul.bf16.gmra.mxu0 %v296
  %v936 = vpop.f32.mrf.mxu0
  %v937 = vadd.f32 %v848, %v936
  %v938 = vpop.f32.mrf.mxu0
  %v939 = vadd.f32 %v850, %v938
  %940 = vmatmul.bf16.gmra.mxu0 %v303
  %v941 = vpop.f32.mrf.mxu0
  %v942 = vadd.f32 %v853, %v941
  %v943 = vpop.f32.mrf.mxu0
  %v944 = vadd.f32 %v855, %v943
  %945 = vmatmul.bf16.gmra.mxu0 %v310
  %v946 = vpop.f32.mrf.mxu0
  %v947 = vadd.f32 %v858, %v946
  %v948 = vpop.f32.mrf.mxu0
  %v949 = vadd.f32 %v860, %v948
  %950 = vmatmul.bf16.gmra.mxu0 %v317
  %v951 = vpop.f32.mrf.mxu0
  %v952 = vadd.f32 %v863, %v951
  %v953 = vpop.f32.mrf.mxu0
  %v954 = vadd.f32 %v865, %v953
  %955 = vmatmul.bf16.gmra.mxu0 %v324
  %v956 = vpop.f32.mrf.mxu0
  %v957 = vadd.f32 %v868, %v956
  %v958 = vpop.f32.mrf.mxu0
  %v959 = vadd.f32 %v870, %v958
  %960 = vmatmul.bf16.gmra.mxu0 %v331
  %v961 = vpop.f32.mrf.mxu0
  %v962 = vadd.f32 %v873, %v961
  %v963 = vpop.f32.mrf.mxu0
  %v964 = vadd.f32 %v875, %v963
  %965 = vmatmul.bf16.gmra.mxu0 %v338
  %v966 = vpop.f32.mrf.mxu0
  %v967 = vadd.f32 %v878, %v966
  %v968 = vpop.f32.mrf.mxu0
  %v969 = vadd.f32 %v880, %v968
  %970 = vmatmul.bf16.gmra.mxu0 %v345
  %v971 = vpop.f32.mrf.mxu0
  %v972 = vadd.f32 %v883, %v971
  %v973 = vpop.f32.mrf.mxu0
  %v974 = vadd.f32 %v885, %v973
  %975 = vmatmul.bf16.gmra.mxu0 %v352
  %v976 = vpop.f32.mrf.mxu0
  %v977 = vadd.f32 %v888, %v976
  %v978 = vpop.f32.mrf.mxu0
  %v979 = vadd.f32 %v890, %v978
  %980 = vdwg.mxu0
  %981 = vmatpush.bf16.msra.mxu0 %v679
  %982 = vmatpush.bf16.msra.mxu0 %v678
  %983 = vmatpush.bf16.msra.mxu0 %v677
  %984 = vmatpush.bf16.msra.mxu0 %v676
  %985 = vmatpush.bf16.msra.mxu0 %v675
  %986 = vmatpush.bf16.msra.mxu0 %v674
  %987 = vmatpush.bf16.msra.mxu0 %v673
  %988 = vmatpush.bf16.msra.mxu0 %v672
  %989 = vmatmul.bf16.gmra.mxu0 %v248
  %v990 = vpop.f32.mrf.mxu0
  %v991 = vadd.f32 %v902, %v990
  %v992 = vpop.f32.mrf.mxu0
  %v993 = vadd.f32 %v904, %v992
  %994 = vmatmul.bf16.gmra.mxu0 %v255
  %v995 = vpop.f32.mrf.mxu0
  %v996 = vadd.f32 %v907, %v995
  %v997 = vpop.f32.mrf.mxu0
  %v998 = vadd.f32 %v909, %v997
  %999 = vmatmul.bf16.gmra.mxu0 %v262
  %v1000 = vpop.f32.mrf.mxu0
  %v1001 = vadd.f32 %v912, %v1000
  %v1002 = vpop.f32.mrf.mxu0
  %v1003 = vadd.f32 %v914, %v1002
  %1004 = vmatmul.bf16.gmra.mxu0 %v269
  %v1005 = vpop.f32.mrf.mxu0
  %v1006 = vadd.f32 %v917, %v1005
  %v1007 = vpop.f32.mrf.mxu0
  %v1008 = vadd.f32 %v919, %v1007
  %1009 = vmatmul.bf16.gmra.mxu0 %v276
  %v1010 = vpop.f32.mrf.mxu0
  %v1011 = vadd.f32 %v922, %v1010
  %v1012 = vpop.f32.mrf.mxu0
  %v1013 = vadd.f32 %v924, %v1012
  %1014 = vmatmul.bf16.gmra.mxu0 %v283
  %v1015 = vpop.f32.mrf.mxu0
  %v1016 = vadd.f32 %v927, %v1015
  %v1017 = vpop.f32.mrf.mxu0
  %v1018 = vadd.f32 %v929, %v1017
  %1019 = vmatmul.bf16.gmra.mxu0 %v290
  %v1020 = vpop.f32.mrf.mxu0
  %v1021 = vadd.f32 %v932, %v1020
  %v1022 = vpop.f32.mrf.mxu0
  %v1023 = vadd.f32 %v934, %v1022
  %1024 = vmatmul.bf16.gmra.mxu0 %v297
  %v1025 = vpop.f32.mrf.mxu0
  %v1026 = vadd.f32 %v937, %v1025
  %v1027 = vpop.f32.mrf.mxu0
  %v1028 = vadd.f32 %v939, %v1027
  %1029 = vmatmul.bf16.gmra.mxu0 %v304
  %v1030 = vpop.f32.mrf.mxu0
  %v1031 = vadd.f32 %v942, %v1030
  %v1032 = vpop.f32.mrf.mxu0
  %v1033 = vadd.f32 %v944, %v1032
  %1034 = vmatmul.bf16.gmra.mxu0 %v311
  %v1035 = vpop.f32.mrf.mxu0
  %v1036 = vadd.f32 %v947, %v1035
  %v1037 = vpop.f32.mrf.mxu0
  %v1038 = vadd.f32 %v949, %v1037
  %1039 = vmatmul.bf16.gmra.mxu0 %v318
  %v1040 = vpop.f32.mrf.mxu0
  %v1041 = vadd.f32 %v952, %v1040
  %v1042 = vpop.f32.mrf.mxu0
  %v1043 = vadd.f32 %v954, %v1042
  %1044 = vmatmul.bf16.gmra.mxu0 %v325
  %v1045 = vpop.f32.mrf.mxu0
  %v1046 = vadd.f32 %v957, %v1045
  %v1047 = vpop.f32.mrf.mxu0
  %v1048 = vadd.f32 %v959, %v1047
  %1049 = vmatmul.bf16.gmra.mxu0 %v332
  %v1050 = vpop.f32.mrf.mxu0
  %v1051 = vadd.f32 %v962, %v1050
  %v1052 = vpop.f32.mrf.mxu0
  %v1053 = vadd.f32 %v964, %v1052
  %1054 = vmatmul.bf16.gmra.mxu0 %v339
  %v1055 = vpop.f32.mrf.mxu0
  %v1056 = vadd.f32 %v967, %v1055
  %v1057 = vpop.f32.mrf.mxu0
  %v1058 = vadd.f32 %v969, %v1057
  %1059 = vmatmul.bf16.gmra.mxu0 %v346
  %v1060 = vpop.f32.mrf.mxu0
  %v1061 = vadd.f32 %v972, %v1060
  %v1062 = vpop.f32.mrf.mxu0
  %v1063 = vadd.f32 %v974, %v1062
  %1064 = vmatmul.bf16.gmra.mxu0 %v353
  %v1065 = vpop.f32.mrf.mxu0
  %v1066 = vadd.f32 %v977, %v1065
  %v1067 = vpop.f32.mrf.mxu0
  %v1068 = vadd.f32 %v979, %v1067
  %1069 = vdwg.mxu0
  %1070 = vmatpush.bf16.msra.mxu0 %v687
  %1071 = vmatpush.bf16.msra.mxu0 %v686
  %1072 = vmatpush.bf16.msra.mxu0 %v685
  %1073 = vmatpush.bf16.msra.mxu0 %v684
  %1074 = vmatpush.bf16.msra.mxu0 %v683
  %1075 = vmatpush.bf16.msra.mxu0 %v682
  %1076 = vmatpush.bf16.msra.mxu0 %v681
  %1077 = vmatpush.bf16.msra.mxu0 %v680
  %1078 = vmatmul.bf16.gmra.mxu0 %v249
  %v1079 = vpop.f32.mrf.mxu0
  %v1080 = vadd.f32 %v991, %v1079
  %v1081 = vpop.f32.mrf.mxu0
  %v1082 = vadd.f32 %v993, %v1081
  %1083 = vmatmul.bf16.gmra.mxu0 %v256
  %v1084 = vpop.f32.mrf.mxu0
  %v1085 = vadd.f32 %v996, %v1084
  %v1086 = vpop.f32.mrf.mxu0
  %v1087 = vadd.f32 %v998, %v1086
  %1088 = vmatmul.bf16.gmra.mxu0 %v263
  %v1089 = vpop.f32.mrf.mxu0
  %v1090 = vadd.f32 %v1001, %v1089
  %v1091 = vpop.f32.mrf.mxu0
  %v1092 = vadd.f32 %v1003, %v1091
  %1093 = vmatmul.bf16.gmra.mxu0 %v270
  %v1094 = vpop.f32.mrf.mxu0
  %v1095 = vadd.f32 %v1006, %v1094
  %v1096 = vpop.f32.mrf.mxu0
  %v1097 = vadd.f32 %v1008, %v1096
  %1098 = vmatmul.bf16.gmra.mxu0 %v277
  %v1099 = vpop.f32.mrf.mxu0
  %v1100 = vadd.f32 %v1011, %v1099
  %v1101 = vpop.f32.mrf.mxu0
  %v1102 = vadd.f32 %v1013, %v1101
  %1103 = vmatmul.bf16.gmra.mxu0 %v284
  %v1104 = vpop.f32.mrf.mxu0
  %v1105 = vadd.f32 %v1016, %v1104
  %v1106 = vpop.f32.mrf.mxu0
  %v1107 = vadd.f32 %v1018, %v1106
  %1108 = vmatmul.bf16.gmra.mxu0 %v291
  %v1109 = vpop.f32.mrf.mxu0
  %v1110 = vadd.f32 %v1021, %v1109
  %v1111 = vpop.f32.mrf.mxu0
  %v1112 = vadd.f32 %v1023, %v1111
  %1113 = vmatmul.bf16.gmra.mxu0 %v298
  %v1114 = vpop.f32.mrf.mxu0
  %v1115 = vadd.f32 %v1026, %v1114
  %v1116 = vpop.f32.mrf.mxu0
  %v1117 = vadd.f32 %v1028, %v1116
  %1118 = vmatmul.bf16.gmra.mxu0 %v305
  %v1119 = vpop.f32.mrf.mxu0
  %v1120 = vadd.f32 %v1031, %v1119
  %v1121 = vpop.f32.mrf.mxu0
  %v1122 = vadd.f32 %v1033, %v1121
  %1123 = vmatmul.bf16.gmra.mxu0 %v312
  %v1124 = vpop.f32.mrf.mxu0
  %v1125 = vadd.f32 %v1036, %v1124
  %v1126 = vpop.f32.mrf.mxu0
  %v1127 = vadd.f32 %v1038, %v1126
  %1128 = vmatmul.bf16.gmra.mxu0 %v319
  %v1129 = vpop.f32.mrf.mxu0
  %v1130 = vadd.f32 %v1041, %v1129
  %v1131 = vpop.f32.mrf.mxu0
  %v1132 = vadd.f32 %v1043, %v1131
  %1133 = vmatmul.bf16.gmra.mxu0 %v326
  %v1134 = vpop.f32.mrf.mxu0
  %v1135 = vadd.f32 %v1046, %v1134
  %v1136 = vpop.f32.mrf.mxu0
  %v1137 = vadd.f32 %v1048, %v1136
  %1138 = vmatmul.bf16.gmra.mxu0 %v333
  %v1139 = vpop.f32.mrf.mxu0
  %v1140 = vadd.f32 %v1051, %v1139
  %v1141 = vpop.f32.mrf.mxu0
  %v1142 = vadd.f32 %v1053, %v1141
  %1143 = vmatmul.bf16.gmra.mxu0 %v340
  %v1144 = vpop.f32.mrf.mxu0
  %v1145 = vadd.f32 %v1056, %v1144
  %v1146 = vpop.f32.mrf.mxu0
  %v1147 = vadd.f32 %v1058, %v1146
  %1148 = vmatmul.bf16.gmra.mxu0 %v347
  %v1149 = vpop.f32.mrf.mxu0
  %v1150 = vadd.f32 %v1061, %v1149
  %v1151 = vpop.f32.mrf.mxu0
  %v1152 = vadd.f32 %v1063, %v1151
  %1153 = vmatmul.bf16.gmra.mxu0 %v354
  %v1154 = vpop.f32.mrf.mxu0
  %v1155 = vadd.f32 %v1066, %v1154
  %v1156 = vpop.f32.mrf.mxu0
  %v1157 = vadd.f32 %v1068, %v1156
  %1158 = vdwg.mxu0
  %1159 = vmatpush.bf16.msra.mxu0 %v695
  %1160 = vmatpush.bf16.msra.mxu0 %v694
  %1161 = vmatpush.bf16.msra.mxu0 %v693
  %1162 = vmatpush.bf16.msra.mxu0 %v692
  %1163 = vmatpush.bf16.msra.mxu0 %v691
  %1164 = vmatpush.bf16.msra.mxu0 %v690
  %1165 = vmatpush.bf16.msra.mxu0 %v689
  %1166 = vmatpush.bf16.msra.mxu0 %v688
  %1167 = vmatmul.bf16.gmra.mxu0 %v250
  %v1168 = vpop.f32.mrf.mxu0
  %v1169 = vadd.f32 %v1080, %v1168
  %v1170 = vpop.f32.mrf.mxu0
  %v1171 = vadd.f32 %v1082, %v1170
  %1172 = vmatmul.bf16.gmra.mxu0 %v257
  %v1173 = vpop.f32.mrf.mxu0
  %v1174 = vadd.f32 %v1085, %v1173
  %v1175 = vpop.f32.mrf.mxu0
  %v1176 = vadd.f32 %v1087, %v1175
  %1177 = vmatmul.bf16.gmra.mxu0 %v264
  %v1178 = vpop.f32.mrf.mxu0
  %v1179 = vadd.f32 %v1090, %v1178
  %v1180 = vpop.f32.mrf.mxu0
  %v1181 = vadd.f32 %v1092, %v1180
  %1182 = vmatmul.bf16.gmra.mxu0 %v271
  %v1183 = vpop.f32.mrf.mxu0
  %v1184 = vadd.f32 %v1095, %v1183
  %v1185 = vpop.f32.mrf.mxu0
  %v1186 = vadd.f32 %v1097, %v1185
  %1187 = vmatmul.bf16.gmra.mxu0 %v278
  %v1188 = vpop.f32.mrf.mxu0
  %v1189 = vadd.f32 %v1100, %v1188
  %v1190 = vpop.f32.mrf.mxu0
  %v1191 = vadd.f32 %v1102, %v1190
  %1192 = vmatmul.bf16.gmra.mxu0 %v285
  %v1193 = vpop.f32.mrf.mxu0
  %v1194 = vadd.f32 %v1105, %v1193
  %v1195 = vpop.f32.mrf.mxu0
  %v1196 = vadd.f32 %v1107, %v1195
  %1197 = vmatmul.bf16.gmra.mxu0 %v292
  %v1198 = vpop.f32.mrf.mxu0
  %v1199 = vadd.f32 %v1110, %v1198
  %v1200 = vpop.f32.mrf.mxu0
  %v1201 = vadd.f32 %v1112, %v1200
  %1202 = vmatmul.bf16.gmra.mxu0 %v299
  %v1203 = vpop.f32.mrf.mxu0
  %v1204 = vadd.f32 %v1115, %v1203
  %v1205 = vpop.f32.mrf.mxu0
  %v1206 = vadd.f32 %v1117, %v1205
  %1207 = vmatmul.bf16.gmra.mxu0 %v306
  %v1208 = vpop.f32.mrf.mxu0
  %v1209 = vadd.f32 %v1120, %v1208
  %v1210 = vpop.f32.mrf.mxu0
  %v1211 = vadd.f32 %v1122, %v1210
  %1212 = vmatmul.bf16.gmra.mxu0 %v313
  %v1213 = vpop.f32.mrf.mxu0
  %v1214 = vadd.f32 %v1125, %v1213
  %v1215 = vpop.f32.mrf.mxu0
  %v1216 = vadd.f32 %v1127, %v1215
  %1217 = vmatmul.bf16.gmra.mxu0 %v320
  %v1218 = vpop.f32.mrf.mxu0
  %v1219 = vadd.f32 %v1130, %v1218
  %v1220 = vpop.f32.mrf.mxu0
  %v1221 = vadd.f32 %v1132, %v1220
  %1222 = vmatmul.bf16.gmra.mxu0 %v327
  %v1223 = vpop.f32.mrf.mxu0
  %v1224 = vadd.f32 %v1135, %v1223
  %v1225 = vpop.f32.mrf.mxu0
  %v1226 = vadd.f32 %v1137, %v1225
  %1227 = vmatmul.bf16.gmra.mxu0 %v334
  %v1228 = vpop.f32.mrf.mxu0
  %v1229 = vadd.f32 %v1140, %v1228
  %v1230 = vpop.f32.mrf.mxu0
  %v1231 = vadd.f32 %v1142, %v1230
  %1232 = vmatmul.bf16.gmra.mxu0 %v341
  %v1233 = vpop.f32.mrf.mxu0
  %v1234 = vadd.f32 %v1145, %v1233
  %v1235 = vpop.f32.mrf.mxu0
  %v1236 = vadd.f32 %v1147, %v1235
  %1237 = vmatmul.bf16.gmra.mxu0 %v348
  %v1238 = vpop.f32.mrf.mxu0
  %v1239 = vadd.f32 %v1150, %v1238
  %v1240 = vpop.f32.mrf.mxu0
  %v1241 = vadd.f32 %v1152, %v1240
  %1242 = vmatmul.bf16.gmra.mxu0 %v355
  %v1243 = vpop.f32.mrf.mxu0
  %v1244 = vadd.f32 %v1155, %v1243
  %v1245 = vpop.f32.mrf.mxu0
  %v1246 = vadd.f32 %v1157, %v1245
  %1247 = vdwg.mxu0
  %1248 = vmatpush.bf16.msra.mxu0 %v703
  %1249 = vmatpush.bf16.msra.mxu0 %v702
  %1250 = vmatpush.bf16.msra.mxu0 %v701
  %1251 = vmatpush.bf16.msra.mxu0 %v700
  %1252 = vmatpush.bf16.msra.mxu0 %v699
  %1253 = vmatpush.bf16.msra.mxu0 %v698
  %1254 = vmatpush.bf16.msra.mxu0 %v697
  %1255 = vmatpush.bf16.msra.mxu0 %v696
  %1256 = vmatmul.bf16.gmra.mxu0 %v251
  %v1257 = vpop.f32.mrf.mxu0
  %v1258 = vadd.f32 %v1169, %v1257
  %v1259 = vpop.f32.mrf.mxu0
  %v1260 = vadd.f32 %v1171, %v1259
  %1261 = vmatmul.bf16.gmra.mxu0 %v258
  %v1262 = vpop.f32.mrf.mxu0
  %v1263 = vadd.f32 %v1174, %v1262
  %v1264 = vpop.f32.mrf.mxu0
  %v1265 = vadd.f32 %v1176, %v1264
  %1266 = vmatmul.bf16.gmra.mxu0 %v265
  %v1267 = vpop.f32.mrf.mxu0
  %v1268 = vadd.f32 %v1179, %v1267
  %v1269 = vpop.f32.mrf.mxu0
  %v1270 = vadd.f32 %v1181, %v1269
  %1271 = vmatmul.bf16.gmra.mxu0 %v272
  %v1272 = vpop.f32.mrf.mxu0
  %v1273 = vadd.f32 %v1184, %v1272
  %v1274 = vpop.f32.mrf.mxu0
  %v1275 = vadd.f32 %v1186, %v1274
  %1276 = vmatmul.bf16.gmra.mxu0 %v279
  %v1277 = vpop.f32.mrf.mxu0
  %v1278 = vadd.f32 %v1189, %v1277
  %v1279 = vpop.f32.mrf.mxu0
  %v1280 = vadd.f32 %v1191, %v1279
  %1281 = vmatmul.bf16.gmra.mxu0 %v286
  %v1282 = vpop.f32.mrf.mxu0
  %v1283 = vadd.f32 %v1194, %v1282
  %v1284 = vpop.f32.mrf.mxu0
  %v1285 = vadd.f32 %v1196, %v1284
  %1286 = vmatmul.bf16.gmra.mxu0 %v293
  %v1287 = vpop.f32.mrf.mxu0
  %v1288 = vadd.f32 %v1199, %v1287
  %v1289 = vpop.f32.mrf.mxu0
  %v1290 = vadd.f32 %v1201, %v1289
  %1291 = vmatmul.bf16.gmra.mxu0 %v300
  %v1292 = vpop.f32.mrf.mxu0
  %v1293 = vadd.f32 %v1204, %v1292
  %v1294 = vpop.f32.mrf.mxu0
  %v1295 = vadd.f32 %v1206, %v1294
  %1296 = vmatmul.bf16.gmra.mxu0 %v307
  %v1297 = vpop.f32.mrf.mxu0
  %v1298 = vadd.f32 %v1209, %v1297
  %v1299 = vpop.f32.mrf.mxu0
  %v1300 = vadd.f32 %v1211, %v1299
  %1301 = vmatmul.bf16.gmra.mxu0 %v314
  %v1302 = vpop.f32.mrf.mxu0
  %v1303 = vadd.f32 %v1214, %v1302
  %v1304 = vpop.f32.mrf.mxu0
  %v1305 = vadd.f32 %v1216, %v1304
  %1306 = vmatmul.bf16.gmra.mxu0 %v321
  %v1307 = vpop.f32.mrf.mxu0
  %v1308 = vadd.f32 %v1219, %v1307
  %v1309 = vpop.f32.mrf.mxu0
  %v1310 = vadd.f32 %v1221, %v1309
  %1311 = vmatmul.bf16.gmra.mxu0 %v328
  %v1312 = vpop.f32.mrf.mxu0
  %v1313 = vadd.f32 %v1224, %v1312
  %v1314 = vpop.f32.mrf.mxu0
  %v1315 = vadd.f32 %v1226, %v1314
  %1316 = vmatmul.bf16.gmra.mxu0 %v335
  %v1317 = vpop.f32.mrf.mxu0
  %v1318 = vadd.f32 %v1229, %v1317
  %v1319 = vpop.f32.mrf.mxu0
  %v1320 = vadd.f32 %v1231, %v1319
  %1321 = vmatmul.bf16.gmra.mxu0 %v342
  %v1322 = vpop.f32.mrf.mxu0
  %v1323 = vadd.f32 %v1234, %v1322
  %v1324 = vpop.f32.mrf.mxu0
  %v1325 = vadd.f32 %v1236, %v1324
  %1326 = vmatmul.bf16.gmra.mxu0 %v349
  %v1327 = vpop.f32.mrf.mxu0
  %v1328 = vadd.f32 %v1239, %v1327
  %v1329 = vpop.f32.mrf.mxu0
  %v1330 = vadd.f32 %v1241, %v1329
  %1331 = vmatmul.bf16.gmra.mxu0 %v356
  %v1332 = vpop.f32.mrf.mxu0
  %v1333 = vadd.f32 %v1244, %v1332
  %v1334 = vpop.f32.mrf.mxu0
  %v1335 = vadd.f32 %v1246, %v1334
  %1336 = vdwg.mxu0
  %1337 = vmatpush.bf16.msra.mxu0 0
  %1338 = vmatpush.bf16.msra.mxu0 0
  %1339 = vmatpush.bf16.msra.mxu0 0
  %1340 = vmatpush.bf16.msra.mxu0 0
  %1341 = vmatpush.bf16.msra.mxu0 0
  %1342 = vmatpush.bf16.msra.mxu0 0
  %1343 = vmatpush.bf16.msra.mxu0 0
  %1344 = vmatpush.bf16.msra.mxu0 %v704
  %1345 = vmatmul.bf16.gmra.mxu0 %v756
  %v1346 = vpop.f32.mrf.mxu0
  %v1347 = vadd.f32 %v1258, %v1346
  %v1348 = vpop.f32.mrf.mxu0
  %v1349 = vadd.f32 %v1260, %v1348
  %1350 = vmatmul.bf16.gmra.mxu0 %v759
  %v1351 = vpop.f32.mrf.mxu0
  %v1352 = vadd.f32 %v1263, %v1351
  %v1353 = vpop.f32.mrf.mxu0
  %v1354 = vadd.f32 %v1265, %v1353
  %1355 = vmatmul.bf16.gmra.mxu0 %v762
  %v1356 = vpop.f32.mrf.mxu0
  %v1357 = vadd.f32 %v1268, %v1356
  %v1358 = vpop.f32.mrf.mxu0
  %v1359 = vadd.f32 %v1270, %v1358
  %1360 = vmatmul.bf16.gmra.mxu0 %v765
  %v1361 = vpop.f32.mrf.mxu0
  %v1362 = vadd.f32 %v1273, %v1361
  %v1363 = vpop.f32.mrf.mxu0
  %v1364 = vadd.f32 %v1275, %v1363
  %1365 = vmatmul.bf16.gmra.mxu0 %v768
  %v1366 = vpop.f32.mrf.mxu0
  %v1367 = vadd.f32 %v1278, %v1366
  %v1368 = vpop.f32.mrf.mxu0
  %v1369 = vadd.f32 %v1280, %v1368
  %1370 = vmatmul.bf16.gmra.mxu0 %v771
  %v1371 = vpop.f32.mrf.mxu0
  %v1372 = vadd.f32 %v1283, %v1371
  %v1373 = vpop.f32.mrf.mxu0
  %v1374 = vadd.f32 %v1285, %v1373
  %1375 = vmatmul.bf16.gmra.mxu0 %v774
  %v1376 = vpop.f32.mrf.mxu0
  %v1377 = vadd.f32 %v1288, %v1376
  %v1378 = vpop.f32.mrf.mxu0
  %v1379 = vadd.f32 %v1290, %v1378
  %1380 = vmatmul.bf16.gmra.mxu0 %v777
  %v1381 = vpop.f32.mrf.mxu0
  %v1382 = vadd.f32 %v1293, %v1381
  %v1383 = vpop.f32.mrf.mxu0
  %v1384 = vadd.f32 %v1295, %v1383
  %1385 = vmatmul.bf16.gmra.mxu0 %v780
  %v1386 = vpop.f32.mrf.mxu0
  %v1387 = vadd.f32 %v1298, %v1386
  %v1388 = vpop.f32.mrf.mxu0
  %v1389 = vadd.f32 %v1300, %v1388
  %1390 = vmatmul.bf16.gmra.mxu0 %v783
  %v1391 = vpop.f32.mrf.mxu0
  %v1392 = vadd.f32 %v1303, %v1391
  %v1393 = vpop.f32.mrf.mxu0
  %v1394 = vadd.f32 %v1305, %v1393
  %1395 = vmatmul.bf16.gmra.mxu0 %v786
  %v1396 = vpop.f32.mrf.mxu0
  %v1397 = vadd.f32 %v1308, %v1396
  %v1398 = vpop.f32.mrf.mxu0
  %v1399 = vadd.f32 %v1310, %v1398
  %1400 = vmatmul.bf16.gmra.mxu0 %v789
  %v1401 = vpop.f32.mrf.mxu0
  %v1402 = vadd.f32 %v1313, %v1401
  %v1403 = vpop.f32.mrf.mxu0
  %v1404 = vadd.f32 %v1315, %v1403
  %1405 = vmatmul.bf16.gmra.mxu0 %v792
  %v1406 = vpop.f32.mrf.mxu0
  %v1407 = vadd.f32 %v1318, %v1406
  %v1408 = vpop.f32.mrf.mxu0
  %v1409 = vadd.f32 %v1320, %v1408
  %1410 = vmatmul.bf16.gmra.mxu0 %v795
  %v1411 = vpop.f32.mrf.mxu0
  %v1412 = vadd.f32 %v1323, %v1411
  %v1413 = vpop.f32.mrf.mxu0
  %v1414 = vadd.f32 %v1325, %v1413
  %1415 = vmatmul.bf16.gmra.mxu0 %v798
  %v1416 = vpop.f32.mrf.mxu0
  %v1417 = vadd.f32 %v1328, %v1416
  %v1418 = vpop.f32.mrf.mxu0
  %v1419 = vadd.f32 %v1330, %v1418
  %1420 = vmatmul.bf16.gmra.mxu0 %v801
  %v1421 = vpop.f32.mrf.mxu0
  %v1422 = vadd.f32 %v1333, %v1421
  %v1423 = vpop.f32.mrf.mxu0
  %v1424 = vadd.f32 %v1335, %v1423
  %1425 = vdwg.mxu0
  %v1426 = vmul.f32 %v1347, 0.01
  %v1427 = vmul.f32 %v1349, 0.01
  %v1428 = vmul.f32 %v1352, 0.01
  %v1429 = vmul.f32 %v1354, 0.01
  %v1430 = vmul.f32 %v1357, 0.01
  %v1431 = vmul.f32 %v1359, 0.01
  %v1432 = vmul.f32 %v1362, 0.01
  %v1433 = vmul.f32 %v1364, 0.01
  %v1434 = vmul.f32 %v1367, 0.01
  %v1435 = vmul.f32 %v1369, 0.01
  %v1436 = vmul.f32 %v1372, 0.01
  %v1437 = vmul.f32 %v1374, 0.01
  %v1438 = vmul.f32 %v1377, 0.01
  %v1439 = vmul.f32 %v1379, 0.01
  %v1440 = vmul.f32 %v1382, 0.01
  %v1441 = vmul.f32 %v1384, 0.01
  %v1442 = vmul.f32 %v1387, 0.01
  %v1443 = vmul.f32 %v1389, 0.01
  %v1444 = vmul.f32 %v1392, 0.01
  %v1445 = vmul.f32 %v1394, 0.01
  %v1446 = vmul.f32 %v1397, 0.01
  %v1447 = vmul.f32 %v1399, 0.01
  %v1448 = vmul.f32 %v1402, 0.01
  %v1449 = vmul.f32 %v1404, 0.01
  %v1450 = vmul.f32 %v1407, 0.01
  %v1451 = vmul.f32 %v1409, 0.01
  %v1452 = vmul.f32 %v1412, 0.01
  %v1453 = vmul.f32 %v1414, 0.01
  %v1454 = vmul.f32 %v1417, 0.01
  %v1455 = vmul.f32 %v1419, 0.01
  %v1456 = vmul.f32 %v1422, 0.01
  %v1457 = vmul.f32 %v1424, 0.01
  %v1458 = vmax.f32 %v1347, %v1426
  %v1459 = vmax.f32 %v1349, %v1427
  %v1460 = vmax.f32 %v1352, %v1428
  %v1461 = vmax.f32 %v1354, %v1429
  %v1462 = vmax.f32 %v1357, %v1430
  %v1463 = vmax.f32 %v1359, %v1431
  %v1464 = vmax.f32 %v1362, %v1432
  %v1465 = vmax.f32 %v1364, %v1433
  %v1466 = vmax.f32 %v1367, %v1434
  %v1467 = vmax.f32 %v1369, %v1435
  %v1468 = vmax.f32 %v1372, %v1436
  %v1469 = vmax.f32 %v1374, %v1437
  %v1470 = vmax.f32 %v1377, %v1438
  %v1471 = vmax.f32 %v1379, %v1439
  %v1472 = vmax.f32 %v1382, %v1440
  %v1473 = vmax.f32 %v1384, %v1441
  %v1474 = vmax.f32 %v1387, %v1442
  %v1475 = vmax.f32 %v1389, %v1443
  %v1476 = vmax.f32 %v1392, %v1444
  %v1477 = vmax.f32 %v1394, %v1445
  %v1478 = vmax.f32 %v1397, %v1446
  %v1479 = vmax.f32 %v1399, %v1447
  %v1480 = vmax.f32 %v1402, %v1448
  %v1481 = vmax.f32 %v1404, %v1449
  %v1482 = vmax.f32 %v1407, %v1450
  %v1483 = vmax.f32 %v1409, %v1451
  %v1484 = vmax.f32 %v1412, %v1452
  %v1485 = vmax.f32 %v1414, %v1453
  %v1486 = vmax.f32 %v1417, %v1454
  %v1487 = vmax.f32 %v1419, %v1455
  %v1488 = vmax.f32 %v1422, %v1456
  %v1489 = vmax.f32 %v1424, %v1457
  %v1490 = vld [vmem:[%s3] sm:$0x1]
  %v1492 = vperm.slane %v1490, 0
  %v1494 = vmul.f32 %v1458, %v1492
  %v1495 = vmul.f32 %v1459, %v1492
  %v1496 = vmul.f32 %v1460, %v1492
  %v1497 = vmul.f32 %v1461, %v1492
  %v1498 = vmul.f32 %v1462, %v1492
  %v1499 = vmul.f32 %v1463, %v1492
  %v1500 = vmul.f32 %v1464, %v1492
  %v1501 = vmul.f32 %v1465, %v1492
  %v1502 = vmul.f32 %v1466, %v1492
  %v1503 = vmul.f32 %v1467, %v1492
  %v1504 = vmul.f32 %v1468, %v1492
  %v1505 = vmul.f32 %v1469, %v1492
  %v1506 = vmul.f32 %v1470, %v1492
  %v1507 = vmul.f32 %v1471, %v1492
  %v1508 = vmul.f32 %v1472, %v1492
  %v1509 = vmul.f32 %v1473, %v1492
  %v1510 = vmul.f32 %v1474, %v1492
  %v1511 = vmul.f32 %v1475, %v1492
  %v1512 = vmul.f32 %v1476, %v1492
  %v1513 = vmul.f32 %v1477, %v1492
  %v1514 = vmul.f32 %v1478, %v1492
  %v1515 = vmul.f32 %v1479, %v1492
  %v1516 = vmul.f32 %v1480, %v1492
  %v1517 = vmul.f32 %v1481, %v1492
  %v1518 = vmul.f32 %v1482, %v1492
  %v1519 = vmul.f32 %v1483, %v1492
  %v1520 = vmul.f32 %v1484, %v1492
  %v1521 = vmul.f32 %v1485, %v1492
  %v1522 = vmul.f32 %v1486, %v1492
  %v1523 = vmul.f32 %v1487, %v1492
  %v1524 = vmul.f32 %v1488, %v1492
  %v1525 = vmul.f32 %v1489, %v1492
  %1526 = vadd.xlane.f32.xlu0 %v1494
  %v1527 = vpop.xlane.xlu0 %1526
  %1528 = vadd.xlane.f32.xlu0 %v1495
  %v1529 = vpop.xlane.xlu0 %1528
  %1530 = vadd.xlane.f32.xlu0 %v1496
  %v1531 = vpop.xlane.xlu0 %1530
  %1532 = vadd.xlane.f32.xlu0 %v1497
  %v1533 = vpop.xlane.xlu0 %1532
  %1534 = vadd.xlane.f32.xlu0 %v1498
  %v1535 = vpop.xlane.xlu0 %1534
  %1536 = vadd.xlane.f32.xlu0 %v1499
  %v1537 = vpop.xlane.xlu0 %1536
  %1538 = vadd.xlane.f32.xlu0 %v1500
  %v1539 = vpop.xlane.xlu0 %1538
  %1540 = vadd.xlane.f32.xlu0 %v1501
  %v1541 = vpop.xlane.xlu0 %1540
  %1542 = vadd.xlane.f32.xlu0 %v1502
  %v1543 = vpop.xlane.xlu0 %1542
  %1544 = vadd.xlane.f32.xlu0 %v1503
  %v1545 = vpop.xlane.xlu0 %1544
  %1546 = vadd.xlane.f32.xlu0 %v1504
  %v1547 = vpop.xlane.xlu0 %1546
  %1548 = vadd.xlane.f32.xlu0 %v1505
  %v1549 = vpop.xlane.xlu0 %1548
  %1550 = vadd.xlane.f32.xlu0 %v1506
  %v1551 = vpop.xlane.xlu0 %1550
  %1552 = vadd.xlane.f32.xlu0 %v1507
  %v1553 = vpop.xlane.xlu0 %1552
  %1554 = vadd.xlane.f32.xlu0 %v1508
  %v1555 = vpop.xlane.xlu0 %1554
  %1556 = vadd.xlane.f32.xlu0 %v1509
  %v1557 = vpop.xlane.xlu0 %1556
  %1558 = vadd.xlane.f32.xlu0 %v1510
  %v1559 = vpop.xlane.xlu0 %1558
  %1560 = vadd.xlane.f32.xlu0 %v1511
  %v1561 = vpop.xlane.xlu0 %1560
  %1562 = vadd.xlane.f32.xlu0 %v1512
  %v1563 = vpop.xlane.xlu0 %1562
  %1564 = vadd.xlane.f32.xlu0 %v1513
  %v1565 = vpop.xlane.xlu0 %1564
  %1566 = vadd.xlane.f32.xlu0 %v1514
  %v1567 = vpop.xlane.xlu0 %1566
  %1568 = vadd.xlane.f32.xlu0 %v1515
  %v1569 = vpop.xlane.xlu0 %1568
  %1570 = vadd.xlane.f32.xlu0 %v1516
  %v1571 = vpop.xlane.xlu0 %1570
  %1572 = vadd.xlane.f32.xlu0 %v1517
  %v1573 = vpop.xlane.xlu0 %1572
  %1574 = vadd.xlane.f32.xlu0 %v1518
  %v1575 = vpop.xlane.xlu0 %1574
  %1576 = vadd.xlane.f32.xlu0 %v1519
  %v1577 = vpop.xlane.xlu0 %1576
  %1578 = vadd.xlane.f32.xlu0 %v1520
  %v1579 = vpop.xlane.xlu0 %1578
  %1580 = vadd.xlane.f32.xlu0 %v1521
  %v1581 = vpop.xlane.xlu0 %1580
  %1582 = vadd.xlane.f32.xlu0 %v1522
  %v1583 = vpop.xlane.xlu0 %1582
  %1584 = vadd.xlane.f32.xlu0 %v1523
  %v1585 = vpop.xlane.xlu0 %1584
  %1586 = vadd.xlane.f32.xlu0 %v1524
  %v1587 = vpop.xlane.xlu0 %1586
  %1588 = vadd.xlane.f32.xlu0 %v1525
  %v1589 = vpop.xlane.xlu0 %1588
  %s1590 = sld [smem:[#allocation2]]
  %v1591 = vstv %s1590
  %v1592 = vadd.f32 %v1527, %v1591
  %v1593 = vadd.f32 %v1529, %v1591
  %v1594 = vadd.f32 %v1531, %v1591
  %v1595 = vadd.f32 %v1533, %v1591
  %v1596 = vadd.f32 %v1535, %v1591
  %v1597 = vadd.f32 %v1537, %v1591
  %v1598 = vadd.f32 %v1539, %v1591
  %v1599 = vadd.f32 %v1541, %v1591
  %v1600 = vadd.f32 %v1543, %v1591
  %v1601 = vadd.f32 %v1545, %v1591
  %v1602 = vadd.f32 %v1547, %v1591
  %v1603 = vadd.f32 %v1549, %v1591
  %v1604 = vadd.f32 %v1551, %v1591
  %v1605 = vadd.f32 %v1553, %v1591
  %v1606 = vadd.f32 %v1555, %v1591
  %v1607 = vadd.f32 %v1557, %v1591
  %v1608 = vadd.f32 %v1559, %v1591
  %v1609 = vadd.f32 %v1561, %v1591
  %v1610 = vadd.f32 %v1563, %v1591
  %v1611 = vadd.f32 %v1565, %v1591
  %v1612 = vadd.f32 %v1567, %v1591
  %v1613 = vadd.f32 %v1569, %v1591
  %v1614 = vadd.f32 %v1571, %v1591
  %v1615 = vadd.f32 %v1573, %v1591
  %v1616 = vadd.f32 %v1575, %v1591
  %v1617 = vadd.f32 %v1577, %v1591
  %v1618 = vadd.f32 %v1579, %v1591
  %v1619 = vadd.f32 %v1581, %v1591
  %v1620 = vadd.f32 %v1583, %v1591
  %v1621 = vadd.f32 %v1585, %v1591
  %v1622 = vadd.f32 %v1587, %v1591
  %v1623 = vadd.f32 %v1589, %v1591
  %v1624 = vand.u32 2147483647, %v1592
  %v1625 = vand.u32 2147483647, %v1593
  %v1626 = vand.u32 2147483647, %v1594
  %v1627 = vand.u32 2147483647, %v1595
  %v1628 = vand.u32 2147483647, %v1596
  %v1629 = vand.u32 2147483647, %v1597
  %v1630 = vand.u32 2147483647, %v1598
  %v1631 = vand.u32 2147483647, %v1599
  %v1632 = vand.u32 2147483647, %v1600
  %v1633 = vand.u32 2147483647, %v1601
  %v1634 = vand.u32 2147483647, %v1602
  %v1635 = vand.u32 2147483647, %v1603
  %v1636 = vand.u32 2147483647, %v1604
  %v1637 = vand.u32 2147483647, %v1605
  %v1638 = vand.u32 2147483647, %v1606
  %v1639 = vand.u32 2147483647, %v1607
  %v1640 = vand.u32 2147483647, %v1608
  %v1641 = vand.u32 2147483647, %v1609
  %v1642 = vand.u32 2147483647, %v1610
  %v1643 = vand.u32 2147483647, %v1611
  %v1644 = vand.u32 2147483647, %v1612
  %v1645 = vand.u32 2147483647, %v1613
  %v1646 = vand.u32 2147483647, %v1614
  %v1647 = vand.u32 2147483647, %v1615
  %v1648 = vand.u32 2147483647, %v1616
  %v1649 = vand.u32 2147483647, %v1617
  %v1650 = vand.u32 2147483647, %v1618
  %v1651 = vand.u32 2147483647, %v1619
  %v1652 = vand.u32 2147483647, %v1620
  %v1653 = vand.u32 2147483647, %v1621
  %v1654 = vand.u32 2147483647, %v1622
  %v1655 = vand.u32 2147483647, %v1623
  %v1656 = vsub.f32 0.0, %v1624
  %v1657 = vsub.f32 0.0, %v1625
  %v1658 = vsub.f32 0.0, %v1626
  %v1659 = vsub.f32 0.0, %v1627
  %v1660 = vsub.f32 0.0, %v1628
  %v1661 = vsub.f32 0.0, %v1629
  %v1662 = vsub.f32 0.0, %v1630
  %v1663 = vsub.f32 0.0, %v1631
  %v1664 = vsub.f32 0.0, %v1632
  %v1665 = vsub.f32 0.0, %v1633
  %v1666 = vsub.f32 0.0, %v1634
  %v1667 = vsub.f32 0.0, %v1635
  %v1668 = vsub.f32 0.0, %v1636
  %v1669 = vsub.f32 0.0, %v1637
  %v1670 = vsub.f32 0.0, %v1638
  %v1671 = vsub.f32 0.0, %v1639
  %v1672 = vsub.f32 0.0, %v1640
  %v1673 = vsub.f32 0.0, %v1641
  %v1674 = vsub.f32 0.0, %v1642
  %v1675 = vsub.f32 0.0, %v1643
  %v1676 = vsub.f32 0.0, %v1644
  %v1677 = vsub.f32 0.0, %v1645
  %v1678 = vsub.f32 0.0, %v1646
  %v1679 = vsub.f32 0.0, %v1647
  %v1680 = vsub.f32 0.0, %v1648
  %v1681 = vsub.f32 0.0, %v1649
  %v1682 = vsub.f32 0.0, %v1650
  %v1683 = vsub.f32 0.0, %v1651
  %v1684 = vsub.f32 0.0, %v1652
  %v1685 = vsub.f32 0.0, %v1653
  %v1686 = vsub.f32 0.0, %v1654
  %v1687 = vsub.f32 0.0, %v1655
  %v1688 = vmul.f32 %v1656, 1.442695
  %v1689 = vpow.pop %v1688
  %v1690 = vmul.f32 %v1657, 1.442695
  %v1691 = vpow.pop %v1690
  %v1692 = vmul.f32 %v1658, 1.442695
  %v1693 = vpow.pop %v1692
  %v1694 = vmul.f32 %v1659, 1.442695
  %v1695 = vpow.pop %v1694
  %v1696 = vmul.f32 %v1660, 1.442695
  %v1697 = vpow.pop %v1696
  %v1698 = vmul.f32 %v1661, 1.442695
  %v1699 = vpow.pop %v1698
  %v1700 = vmul.f32 %v1662, 1.442695
  %v1701 = vpow.pop %v1700
  %v1702 = vmul.f32 %v1663, 1.442695
  %v1703 = vpow.pop %v1702
  %v1704 = vmul.f32 %v1664, 1.442695
  %v1705 = vpow.pop %v1704
  %v1706 = vmul.f32 %v1665, 1.442695
  %v1707 = vpow.pop %v1706
  %v1708 = vmul.f32 %v1666, 1.442695
  %v1709 = vpow.pop %v1708
  %v1710 = vmul.f32 %v1667, 1.442695
  %v1711 = vpow.pop %v1710
  %v1712 = vmul.f32 %v1668, 1.442695
  %v1713 = vpow.pop %v1712
  %v1714 = vmul.f32 %v1669, 1.442695
  %v1715 = vpow.pop %v1714
  %v1716 = vmul.f32 %v1670, 1.442695
  %v1717 = vpow.pop %v1716
  %v1718 = vmul.f32 %v1671, 1.442695
  %v1719 = vpow.pop %v1718
  %v1720 = vmul.f32 %v1672, 1.442695
  %v1721 = vpow.pop %v1720
  %v1722 = vmul.f32 %v1673, 1.442695
  %v1723 = vpow.pop %v1722
  %v1724 = vmul.f32 %v1674, 1.442695
  %v1725 = vpow.pop %v1724
  %v1726 = vmul.f32 %v1675, 1.442695
  %v1727 = vpow.pop %v1726
  %v1728 = vmul.f32 %v1676, 1.442695
  %v1729 = vpow.pop %v1728
  %v1730 = vmul.f32 %v1677, 1.442695
  %v1731 = vpow.pop %v1730
  %v1732 = vmul.f32 %v1678, 1.442695
  %v1733 = vpow.pop %v1732
  %v1734 = vmul.f32 %v1679, 1.442695
  %v1735 = vpow.pop %v1734
  %v1736 = vmul.f32 %v1680, 1.442695
  %v1737 = vpow.pop %v1736
  %v1738 = vmul.f32 %v1681, 1.442695
  %v1739 = vpow.pop %v1738
  %v1740 = vmul.f32 %v1682, 1.442695
  %v1741 = vpow.pop %v1740
  %v1742 = vmul.f32 %v1683, 1.442695
  %v1743 = vpow.pop %v1742
  %v1744 = vmul.f32 %v1684, 1.442695
  %v1745 = vpow.pop %v1744
  %v1746 = vmul.f32 %v1685, 1.442695
  %v1747 = vpow.pop %v1746
  %v1748 = vmul.f32 %v1686, 1.442695
  %v1749 = vpow.pop %v1748
  %v1750 = vmul.f32 %v1687, 1.442695
  %v1751 = vpow.pop %v1750
  %v1752 = vadd.f32 %v1689, 1.0
  %v1753 = vadd.f32 %v1691, 1.0
  %v1754 = vadd.f32 %v1693, 1.0
  %v1755 = vadd.f32 %v1695, 1.0
  %v1756 = vadd.f32 %v1697, 1.0
  %v1757 = vadd.f32 %v1699, 1.0
  %v1758 = vadd.f32 %v1701, 1.0
  %v1759 = vadd.f32 %v1703, 1.0
  %v1760 = vadd.f32 %v1705, 1.0
  %v1761 = vadd.f32 %v1707, 1.0
  %v1762 = vadd.f32 %v1709, 1.0
  %v1763 = vadd.f32 %v1711, 1.0
  %v1764 = vadd.f32 %v1713, 1.0
  %v1765 = vadd.f32 %v1715, 1.0
  %v1766 = vadd.f32 %v1717, 1.0
  %v1767 = vadd.f32 %v1719, 1.0
  %v1768 = vadd.f32 %v1721, 1.0
  %v1769 = vadd.f32 %v1723, 1.0
  %v1770 = vadd.f32 %v1725, 1.0
  %v1771 = vadd.f32 %v1727, 1.0
  %v1772 = vadd.f32 %v1729, 1.0
  %v1773 = vadd.f32 %v1731, 1.0
  %v1774 = vadd.f32 %v1733, 1.0
  %v1775 = vadd.f32 %v1735, 1.0
  %v1776 = vadd.f32 %v1737, 1.0
  %v1777 = vadd.f32 %v1739, 1.0
  %v1778 = vadd.f32 %v1741, 1.0
  %v1779 = vadd.f32 %v1743, 1.0
  %v1780 = vadd.f32 %v1745, 1.0
  %v1781 = vadd.f32 %v1747, 1.0
  %v1782 = vadd.f32 %v1749, 1.0
  %v1783 = vadd.f32 %v1751, 1.0
  %v1784 = vrcp.pop %v1752
  %v1785 = vmul.f32 %v1752, %v1784
  %v1786 = vsub.f32 1.0, %v1785
  %v1787 = vmul.f32 %v1784, %v1786
  %v1788 = vadd.f32 %v1784, %v1787
  %vm1789 = vweird.f32 %v1752
  %vm1790 = vweird.f32 %v1784
  %vm1791 = vmor %vm1789, %vm1790
  %v1792 = vsel %vm1791, %v1784, %v1788
  %v1793 = vand.u32 2147483647, %v1752
  %vm1794 = vcmp.eq.f32.partialorder %v1793, 8.507059e+37
  %v1795 = vand.u32 %v1752, 2147483648
  %v1796 = vor.u32 1.1754944e-38, %v1795
  %v1797 = vsel %vm1794, %v1796, %v1792
  %v1798 = vrcp.pop %v1753
  %v1799 = vmul.f32 %v1753, %v1798
  %v1800 = vsub.f32 1.0, %v1799
  %v1801 = vmul.f32 %v1798, %v1800
  %v1802 = vadd.f32 %v1798, %v1801
  %vm1803 = vweird.f32 %v1753
  %vm1804 = vweird.f32 %v1798
  %vm1805 = vmor %vm1803, %vm1804
  %v1806 = vsel %vm1805, %v1798, %v1802
  %v1807 = vand.u32 2147483647, %v1753
  %vm1808 = vcmp.eq.f32.partialorder %v1807, 8.507059e+37
  %v1809 = vand.u32 %v1753, 2147483648
  %v1810 = vor.u32 1.1754944e-38, %v1809
  %v1811 = vsel %vm1808, %v1810, %v1806
  %v1812 = vrcp.pop %v1754
  %v1813 = vmul.f32 %v1754, %v1812
  %v1814 = vsub.f32 1.0, %v1813
  %v1815 = vmul.f32 %v1812, %v1814
  %v1816 = vadd.f32 %v1812, %v1815
  %vm1817 = vweird.f32 %v1754
  %vm1818 = vweird.f32 %v1812
  %vm1819 = vmor %vm1817, %vm1818
  %v1820 = vsel %vm1819, %v1812, %v1816
  %v1821 = vand.u32 2147483647, %v1754
  %vm1822 = vcmp.eq.f32.partialorder %v1821, 8.507059e+37
  %v1823 = vand.u32 %v1754, 2147483648
  %v1824 = vor.u32 1.1754944e-38, %v1823
  %v1825 = vsel %vm1822, %v1824, %v1820
  %v1826 = vrcp.pop %v1755
  %v1827 = vmul.f32 %v1755, %v1826
  %v1828 = vsub.f32 1.0, %v1827
  %v1829 = vmul.f32 %v1826, %v1828
  %v1830 = vadd.f32 %v1826, %v1829
  %vm1831 = vweird.f32 %v1755
  %vm1832 = vweird.f32 %v1826
  %vm1833 = vmor %vm1831, %vm1832
  %v1834 = vsel %vm1833, %v1826, %v1830
  %v1835 = vand.u32 2147483647, %v1755
  %vm1836 = vcmp.eq.f32.partialorder %v1835, 8.507059e+37
  %v1837 = vand.u32 %v1755, 2147483648
  %v1838 = vor.u32 1.1754944e-38, %v1837
  %v1839 = vsel %vm1836, %v1838, %v1834
  %v1840 = vrcp.pop %v1756
  %v1841 = vmul.f32 %v1756, %v1840
  %v1842 = vsub.f32 1.0, %v1841
  %v1843 = vmul.f32 %v1840, %v1842
  %v1844 = vadd.f32 %v1840, %v1843
  %vm1845 = vweird.f32 %v1756
  %vm1846 = vweird.f32 %v1840
  %vm1847 = vmor %vm1845, %vm1846
  %v1848 = vsel %vm1847, %v1840, %v1844
  %v1849 = vand.u32 2147483647, %v1756
  %vm1850 = vcmp.eq.f32.partialorder %v1849, 8.507059e+37
  %v1851 = vand.u32 %v1756, 2147483648
  %v1852 = vor.u32 1.1754944e-38, %v1851
  %v1853 = vsel %vm1850, %v1852, %v1848
  %v1854 = vrcp.pop %v1757
  %v1855 = vmul.f32 %v1757, %v1854
  %v1856 = vsub.f32 1.0, %v1855
  %v1857 = vmul.f32 %v1854, %v1856
  %v1858 = vadd.f32 %v1854, %v1857
  %vm1859 = vweird.f32 %v1757
  %vm1860 = vweird.f32 %v1854
  %vm1861 = vmor %vm1859, %vm1860
  %v1862 = vsel %vm1861, %v1854, %v1858
  %v1863 = vand.u32 2147483647, %v1757
  %vm1864 = vcmp.eq.f32.partialorder %v1863, 8.507059e+37
  %v1865 = vand.u32 %v1757, 2147483648
  %v1866 = vor.u32 1.1754944e-38, %v1865
  %v1867 = vsel %vm1864, %v1866, %v1862
  %v1868 = vrcp.pop %v1758
  %v1869 = vmul.f32 %v1758, %v1868
  %v1870 = vsub.f32 1.0, %v1869
  %v1871 = vmul.f32 %v1868, %v1870
  %v1872 = vadd.f32 %v1868, %v1871
  %vm1873 = vweird.f32 %v1758
  %vm1874 = vweird.f32 %v1868
  %vm1875 = vmor %vm1873, %vm1874
  %v1876 = vsel %vm1875, %v1868, %v1872
  %v1877 = vand.u32 2147483647, %v1758
  %vm1878 = vcmp.eq.f32.partialorder %v1877, 8.507059e+37
  %v1879 = vand.u32 %v1758, 2147483648
  %v1880 = vor.u32 1.1754944e-38, %v1879
  %v1881 = vsel %vm1878, %v1880, %v1876
  %v1882 = vrcp.pop %v1759
  %v1883 = vmul.f32 %v1759, %v1882
  %v1884 = vsub.f32 1.0, %v1883
  %v1885 = vmul.f32 %v1882, %v1884
  %v1886 = vadd.f32 %v1882, %v1885
  %vm1887 = vweird.f32 %v1759
  %vm1888 = vweird.f32 %v1882
  %vm1889 = vmor %vm1887, %vm1888
  %v1890 = vsel %vm1889, %v1882, %v1886
  %v1891 = vand.u32 2147483647, %v1759
  %vm1892 = vcmp.eq.f32.partialorder %v1891, 8.507059e+37
  %v1893 = vand.u32 %v1759, 2147483648
  %v1894 = vor.u32 1.1754944e-38, %v1893
  %v1895 = vsel %vm1892, %v1894, %v1890
  %v1896 = vrcp.pop %v1760
  %v1897 = vmul.f32 %v1760, %v1896
  %v1898 = vsub.f32 1.0, %v1897
  %v1899 = vmul.f32 %v1896, %v1898
  %v1900 = vadd.f32 %v1896, %v1899
  %vm1901 = vweird.f32 %v1760
  %vm1902 = vweird.f32 %v1896
  %vm1903 = vmor %vm1901, %vm1902
  %v1904 = vsel %vm1903, %v1896, %v1900
  %v1905 = vand.u32 2147483647, %v1760
  %vm1906 = vcmp.eq.f32.partialorder %v1905, 8.507059e+37
  %v1907 = vand.u32 %v1760, 2147483648
  %v1908 = vor.u32 1.1754944e-38, %v1907
  %v1909 = vsel %vm1906, %v1908, %v1904
  %v1910 = vrcp.pop %v1761
  %v1911 = vmul.f32 %v1761, %v1910
  %v1912 = vsub.f32 1.0, %v1911
  %v1913 = vmul.f32 %v1910, %v1912
  %v1914 = vadd.f32 %v1910, %v1913
  %vm1915 = vweird.f32 %v1761
  %vm1916 = vweird.f32 %v1910
  %vm1917 = vmor %vm1915, %vm1916
  %v1918 = vsel %vm1917, %v1910, %v1914
  %v1919 = vand.u32 2147483647, %v1761
  %vm1920 = vcmp.eq.f32.partialorder %v1919, 8.507059e+37
  %v1921 = vand.u32 %v1761, 2147483648
  %v1922 = vor.u32 1.1754944e-38, %v1921
  %v1923 = vsel %vm1920, %v1922, %v1918
  %v1924 = vrcp.pop %v1762
  %v1925 = vmul.f32 %v1762, %v1924
  %v1926 = vsub.f32 1.0, %v1925
  %v1927 = vmul.f32 %v1924, %v1926
  %v1928 = vadd.f32 %v1924, %v1927
  %vm1929 = vweird.f32 %v1762
  %vm1930 = vweird.f32 %v1924
  %vm1931 = vmor %vm1929, %vm1930
  %v1932 = vsel %vm1931, %v1924, %v1928
  %v1933 = vand.u32 2147483647, %v1762
  %vm1934 = vcmp.eq.f32.partialorder %v1933, 8.507059e+37
  %v1935 = vand.u32 %v1762, 2147483648
  %v1936 = vor.u32 1.1754944e-38, %v1935
  %v1937 = vsel %vm1934, %v1936, %v1932
  %v1938 = vrcp.pop %v1763
  %v1939 = vmul.f32 %v1763, %v1938
  %v1940 = vsub.f32 1.0, %v1939
  %v1941 = vmul.f32 %v1938, %v1940
  %v1942 = vadd.f32 %v1938, %v1941
  %vm1943 = vweird.f32 %v1763
  %vm1944 = vweird.f32 %v1938
  %vm1945 = vmor %vm1943, %vm1944
  %v1946 = vsel %vm1945, %v1938, %v1942
  %v1947 = vand.u32 2147483647, %v1763
  %vm1948 = vcmp.eq.f32.partialorder %v1947, 8.507059e+37
  %v1949 = vand.u32 %v1763, 2147483648
  %v1950 = vor.u32 1.1754944e-38, %v1949
  %v1951 = vsel %vm1948, %v1950, %v1946
  %v1952 = vrcp.pop %v1764
  %v1953 = vmul.f32 %v1764, %v1952
  %v1954 = vsub.f32 1.0, %v1953
  %v1955 = vmul.f32 %v1952, %v1954
  %v1956 = vadd.f32 %v1952, %v1955
  %vm1957 = vweird.f32 %v1764
  %vm1958 = vweird.f32 %v1952
  %vm1959 = vmor %vm1957, %vm1958
  %v1960 = vsel %vm1959, %v1952, %v1956
  %v1961 = vand.u32 2147483647, %v1764
  %vm1962 = vcmp.eq.f32.partialorder %v1961, 8.507059e+37
  %v1963 = vand.u32 %v1764, 2147483648
  %v1964 = vor.u32 1.1754944e-38, %v1963
  %v1965 = vsel %vm1962, %v1964, %v1960
  %v1966 = vrcp.pop %v1765
  %v1967 = vmul.f32 %v1765, %v1966
  %v1968 = vsub.f32 1.0, %v1967
  %v1969 = vmul.f32 %v1966, %v1968
  %v1970 = vadd.f32 %v1966, %v1969
  %vm1971 = vweird.f32 %v1765
  %vm1972 = vweird.f32 %v1966
  %vm1973 = vmor %vm1971, %vm1972
  %v1974 = vsel %vm1973, %v1966, %v1970
  %v1975 = vand.u32 2147483647, %v1765
  %vm1976 = vcmp.eq.f32.partialorder %v1975, 8.507059e+37
  %v1977 = vand.u32 %v1765, 2147483648
  %v1978 = vor.u32 1.1754944e-38, %v1977
  %v1979 = vsel %vm1976, %v1978, %v1974
  %v1980 = vrcp.pop %v1766
  %v1981 = vmul.f32 %v1766, %v1980
  %v1982 = vsub.f32 1.0, %v1981
  %v1983 = vmul.f32 %v1980, %v1982
  %v1984 = vadd.f32 %v1980, %v1983
  %vm1985 = vweird.f32 %v1766
  %vm1986 = vweird.f32 %v1980
  %vm1987 = vmor %vm1985, %vm1986
  %v1988 = vsel %vm1987, %v1980, %v1984
  %v1989 = vand.u32 2147483647, %v1766
  %vm1990 = vcmp.eq.f32.partialorder %v1989, 8.507059e+37
  %v1991 = vand.u32 %v1766, 2147483648
  %v1992 = vor.u32 1.1754944e-38, %v1991
  %v1993 = vsel %vm1990, %v1992, %v1988
  %v1994 = vrcp.pop %v1767
  %v1995 = vmul.f32 %v1767, %v1994
  %v1996 = vsub.f32 1.0, %v1995
  %v1997 = vmul.f32 %v1994, %v1996
  %v1998 = vadd.f32 %v1994, %v1997
  %vm1999 = vweird.f32 %v1767
  %vm2000 = vweird.f32 %v1994
  %vm2001 = vmor %vm1999, %vm2000
  %v2002 = vsel %vm2001, %v1994, %v1998
  %v2003 = vand.u32 2147483647, %v1767
  %vm2004 = vcmp.eq.f32.partialorder %v2003, 8.507059e+37
  %v2005 = vand.u32 %v1767, 2147483648
  %v2006 = vor.u32 1.1754944e-38, %v2005
  %v2007 = vsel %vm2004, %v2006, %v2002
  %v2008 = vrcp.pop %v1768
  %v2009 = vmul.f32 %v1768, %v2008
  %v2010 = vsub.f32 1.0, %v2009
  %v2011 = vmul.f32 %v2008, %v2010
  %v2012 = vadd.f32 %v2008, %v2011
  %vm2013 = vweird.f32 %v1768
  %vm2014 = vweird.f32 %v2008
  %vm2015 = vmor %vm2013, %vm2014
  %v2016 = vsel %vm2015, %v2008, %v2012
  %v2017 = vand.u32 2147483647, %v1768
  %vm2018 = vcmp.eq.f32.partialorder %v2017, 8.507059e+37
  %v2019 = vand.u32 %v1768, 2147483648
  %v2020 = vor.u32 1.1754944e-38, %v2019
  %v2021 = vsel %vm2018, %v2020, %v2016
  %v2022 = vrcp.pop %v1769
  %v2023 = vmul.f32 %v1769, %v2022
  %v2024 = vsub.f32 1.0, %v2023
  %v2025 = vmul.f32 %v2022, %v2024
  %v2026 = vadd.f32 %v2022, %v2025
  %vm2027 = vweird.f32 %v1769
  %vm2028 = vweird.f32 %v2022
  %vm2029 = vmor %vm2027, %vm2028
  %v2030 = vsel %vm2029, %v2022, %v2026
  %v2031 = vand.u32 2147483647, %v1769
  %vm2032 = vcmp.eq.f32.partialorder %v2031, 8.507059e+37
  %v2033 = vand.u32 %v1769, 2147483648
  %v2034 = vor.u32 1.1754944e-38, %v2033
  %v2035 = vsel %vm2032, %v2034, %v2030
  %v2036 = vrcp.pop %v1770
  %v2037 = vmul.f32 %v1770, %v2036
  %v2038 = vsub.f32 1.0, %v2037
  %v2039 = vmul.f32 %v2036, %v2038
  %v2040 = vadd.f32 %v2036, %v2039
  %vm2041 = vweird.f32 %v1770
  %vm2042 = vweird.f32 %v2036
  %vm2043 = vmor %vm2041, %vm2042
  %v2044 = vsel %vm2043, %v2036, %v2040
  %v2045 = vand.u32 2147483647, %v1770
  %vm2046 = vcmp.eq.f32.partialorder %v2045, 8.507059e+37
  %v2047 = vand.u32 %v1770, 2147483648
  %v2048 = vor.u32 1.1754944e-38, %v2047
  %v2049 = vsel %vm2046, %v2048, %v2044
  %v2050 = vrcp.pop %v1771
  %v2051 = vmul.f32 %v1771, %v2050
  %v2052 = vsub.f32 1.0, %v2051
  %v2053 = vmul.f32 %v2050, %v2052
  %v2054 = vadd.f32 %v2050, %v2053
  %vm2055 = vweird.f32 %v1771
  %vm2056 = vweird.f32 %v2050
  %vm2057 = vmor %vm2055, %vm2056
  %v2058 = vsel %vm2057, %v2050, %v2054
  %v2059 = vand.u32 2147483647, %v1771
  %vm2060 = vcmp.eq.f32.partialorder %v2059, 8.507059e+37
  %v2061 = vand.u32 %v1771, 2147483648
  %v2062 = vor.u32 1.1754944e-38, %v2061
  %v2063 = vsel %vm2060, %v2062, %v2058
  %v2064 = vrcp.pop %v1772
  %v2065 = vmul.f32 %v1772, %v2064
  %v2066 = vsub.f32 1.0, %v2065
  %v2067 = vmul.f32 %v2064, %v2066
  %v2068 = vadd.f32 %v2064, %v2067
  %vm2069 = vweird.f32 %v1772
  %vm2070 = vweird.f32 %v2064
  %vm2071 = vmor %vm2069, %vm2070
  %v2072 = vsel %vm2071, %v2064, %v2068
  %v2073 = vand.u32 2147483647, %v1772
  %vm2074 = vcmp.eq.f32.partialorder %v2073, 8.507059e+37
  %v2075 = vand.u32 %v1772, 2147483648
  %v2076 = vor.u32 1.1754944e-38, %v2075
  %v2077 = vsel %vm2074, %v2076, %v2072
  %v2078 = vrcp.pop %v1773
  %v2079 = vmul.f32 %v1773, %v2078
  %v2080 = vsub.f32 1.0, %v2079
  %v2081 = vmul.f32 %v2078, %v2080
  %v2082 = vadd.f32 %v2078, %v2081
  %vm2083 = vweird.f32 %v1773
  %vm2084 = vweird.f32 %v2078
  %vm2085 = vmor %vm2083, %vm2084
  %v2086 = vsel %vm2085, %v2078, %v2082
  %v2087 = vand.u32 2147483647, %v1773
  %vm2088 = vcmp.eq.f32.partialorder %v2087, 8.507059e+37
  %v2089 = vand.u32 %v1773, 2147483648
  %v2090 = vor.u32 1.1754944e-38, %v2089
  %v2091 = vsel %vm2088, %v2090, %v2086
  %v2092 = vrcp.pop %v1774
  %v2093 = vmul.f32 %v1774, %v2092
  %v2094 = vsub.f32 1.0, %v2093
  %v2095 = vmul.f32 %v2092, %v2094
  %v2096 = vadd.f32 %v2092, %v2095
  %vm2097 = vweird.f32 %v1774
  %vm2098 = vweird.f32 %v2092
  %vm2099 = vmor %vm2097, %vm2098
  %v2100 = vsel %vm2099, %v2092, %v2096
  %v2101 = vand.u32 2147483647, %v1774
  %vm2102 = vcmp.eq.f32.partialorder %v2101, 8.507059e+37
  %v2103 = vand.u32 %v1774, 2147483648
  %v2104 = vor.u32 1.1754944e-38, %v2103
  %v2105 = vsel %vm2102, %v2104, %v2100
  %v2106 = vrcp.pop %v1775
  %v2107 = vmul.f32 %v1775, %v2106
  %v2108 = vsub.f32 1.0, %v2107
  %v2109 = vmul.f32 %v2106, %v2108
  %v2110 = vadd.f32 %v2106, %v2109
  %vm2111 = vweird.f32 %v1775
  %vm2112 = vweird.f32 %v2106
  %vm2113 = vmor %vm2111, %vm2112
  %v2114 = vsel %vm2113, %v2106, %v2110
  %v2115 = vand.u32 2147483647, %v1775
  %vm2116 = vcmp.eq.f32.partialorder %v2115, 8.507059e+37
  %v2117 = vand.u32 %v1775, 2147483648
  %v2118 = vor.u32 1.1754944e-38, %v2117
  %v2119 = vsel %vm2116, %v2118, %v2114
  %v2120 = vrcp.pop %v1776
  %v2121 = vmul.f32 %v1776, %v2120
  %v2122 = vsub.f32 1.0, %v2121
  %v2123 = vmul.f32 %v2120, %v2122
  %v2124 = vadd.f32 %v2120, %v2123
  %vm2125 = vweird.f32 %v1776
  %vm2126 = vweird.f32 %v2120
  %vm2127 = vmor %vm2125, %vm2126
  %v2128 = vsel %vm2127, %v2120, %v2124
  %v2129 = vand.u32 2147483647, %v1776
  %vm2130 = vcmp.eq.f32.partialorder %v2129, 8.507059e+37
  %v2131 = vand.u32 %v1776, 2147483648
  %v2132 = vor.u32 1.1754944e-38, %v2131
  %v2133 = vsel %vm2130, %v2132, %v2128
  %v2134 = vrcp.pop %v1777
  %v2135 = vmul.f32 %v1777, %v2134
  %v2136 = vsub.f32 1.0, %v2135
  %v2137 = vmul.f32 %v2134, %v2136
  %v2138 = vadd.f32 %v2134, %v2137
  %vm2139 = vweird.f32 %v1777
  %vm2140 = vweird.f32 %v2134
  %vm2141 = vmor %vm2139, %vm2140
  %v2142 = vsel %vm2141, %v2134, %v2138
  %v2143 = vand.u32 2147483647, %v1777
  %vm2144 = vcmp.eq.f32.partialorder %v2143, 8.507059e+37
  %v2145 = vand.u32 %v1777, 2147483648
  %v2146 = vor.u32 1.1754944e-38, %v2145
  %v2147 = vsel %vm2144, %v2146, %v2142
  %v2148 = vrcp.pop %v1778
  %v2149 = vmul.f32 %v1778, %v2148
  %v2150 = vsub.f32 1.0, %v2149
  %v2151 = vmul.f32 %v2148, %v2150
  %v2152 = vadd.f32 %v2148, %v2151
  %vm2153 = vweird.f32 %v1778
  %vm2154 = vweird.f32 %v2148
  %vm2155 = vmor %vm2153, %vm2154
  %v2156 = vsel %vm2155, %v2148, %v2152
  %v2157 = vand.u32 2147483647, %v1778
  %vm2158 = vcmp.eq.f32.partialorder %v2157, 8.507059e+37
  %v2159 = vand.u32 %v1778, 2147483648
  %v2160 = vor.u32 1.1754944e-38, %v2159
  %v2161 = vsel %vm2158, %v2160, %v2156
  %v2162 = vrcp.pop %v1779
  %v2163 = vmul.f32 %v1779, %v2162
  %v2164 = vsub.f32 1.0, %v2163
  %v2165 = vmul.f32 %v2162, %v2164
  %v2166 = vadd.f32 %v2162, %v2165
  %vm2167 = vweird.f32 %v1779
  %vm2168 = vweird.f32 %v2162
  %vm2169 = vmor %vm2167, %vm2168
  %v2170 = vsel %vm2169, %v2162, %v2166
  %v2171 = vand.u32 2147483647, %v1779
  %vm2172 = vcmp.eq.f32.partialorder %v2171, 8.507059e+37
  %v2173 = vand.u32 %v1779, 2147483648
  %v2174 = vor.u32 1.1754944e-38, %v2173
  %v2175 = vsel %vm2172, %v2174, %v2170
  %v2176 = vrcp.pop %v1780
  %v2177 = vmul.f32 %v1780, %v2176
  %v2178 = vsub.f32 1.0, %v2177
  %v2179 = vmul.f32 %v2176, %v2178
  %v2180 = vadd.f32 %v2176, %v2179
  %vm2181 = vweird.f32 %v1780
  %vm2182 = vweird.f32 %v2176
  %vm2183 = vmor %vm2181, %vm2182
  %v2184 = vsel %vm2183, %v2176, %v2180
  %v2185 = vand.u32 2147483647, %v1780
  %vm2186 = vcmp.eq.f32.partialorder %v2185, 8.507059e+37
  %v2187 = vand.u32 %v1780, 2147483648
  %v2188 = vor.u32 1.1754944e-38, %v2187
  %v2189 = vsel %vm2186, %v2188, %v2184
  %v2190 = vrcp.pop %v1781
  %v2191 = vmul.f32 %v1781, %v2190
  %v2192 = vsub.f32 1.0, %v2191
  %v2193 = vmul.f32 %v2190, %v2192
  %v2194 = vadd.f32 %v2190, %v2193
  %vm2195 = vweird.f32 %v1781
  %vm2196 = vweird.f32 %v2190
  %vm2197 = vmor %vm2195, %vm2196
  %v2198 = vsel %vm2197, %v2190, %v2194
  %v2199 = vand.u32 2147483647, %v1781
  %vm2200 = vcmp.eq.f32.partialorder %v2199, 8.507059e+37
  %v2201 = vand.u32 %v1781, 2147483648
  %v2202 = vor.u32 1.1754944e-38, %v2201
  %v2203 = vsel %vm2200, %v2202, %v2198
  %v2204 = vrcp.pop %v1782
  %v2205 = vmul.f32 %v1782, %v2204
  %v2206 = vsub.f32 1.0, %v2205
  %v2207 = vmul.f32 %v2204, %v2206
  %v2208 = vadd.f32 %v2204, %v2207
  %vm2209 = vweird.f32 %v1782
  %vm2210 = vweird.f32 %v2204
  %vm2211 = vmor %vm2209, %vm2210
  %v2212 = vsel %vm2211, %v2204, %v2208
  %v2213 = vand.u32 2147483647, %v1782
  %vm2214 = vcmp.eq.f32.partialorder %v2213, 8.507059e+37
  %v2215 = vand.u32 %v1782, 2147483648
  %v2216 = vor.u32 1.1754944e-38, %v2215
  %v2217 = vsel %vm2214, %v2216, %v2212
  %v2218 = vrcp.pop %v1783
  %v2219 = vmul.f32 %v1783, %v2218
  %v2220 = vsub.f32 1.0, %v2219
  %v2221 = vmul.f32 %v2218, %v2220
  %v2222 = vadd.f32 %v2218, %v2221
  %vm2223 = vweird.f32 %v1783
  %vm2224 = vweird.f32 %v2218
  %vm2225 = vmor %vm2223, %vm2224
  %v2226 = vsel %vm2225, %v2218, %v2222
  %v2227 = vand.u32 2147483647, %v1783
  %vm2228 = vcmp.eq.f32.partialorder %v2227, 8.507059e+37
  %v2229 = vand.u32 %v1783, 2147483648
  %v2230 = vor.u32 1.1754944e-38, %v2229
  %v2231 = vsel %vm2228, %v2230, %v2226
  %vm2232 = vcmp.ge.f32.partialorder %v1592, 0.0
  %vm2233 = vcmp.ge.f32.partialorder %v1593, 0.0
  %vm2234 = vcmp.ge.f32.partialorder %v1594, 0.0
  %vm2235 = vcmp.ge.f32.partialorder %v1595, 0.0
  %vm2236 = vcmp.ge.f32.partialorder %v1596, 0.0
  %vm2237 = vcmp.ge.f32.partialorder %v1597, 0.0
  %vm2238 = vcmp.ge.f32.partialorder %v1598, 0.0
  %vm2239 = vcmp.ge.f32.partialorder %v1599, 0.0
  %vm2240 = vcmp.ge.f32.partialorder %v1600, 0.0
  %vm2241 = vcmp.ge.f32.partialorder %v1601, 0.0
  %vm2242 = vcmp.ge.f32.partialorder %v1602, 0.0
  %vm2243 = vcmp.ge.f32.partialorder %v1603, 0.0
  %vm2244 = vcmp.ge.f32.partialorder %v1604, 0.0
  %vm2245 = vcmp.ge.f32.partialorder %v1605, 0.0
  %vm2246 = vcmp.ge.f32.partialorder %v1606, 0.0
  %vm2247 = vcmp.ge.f32.partialorder %v1607, 0.0
  %vm2248 = vcmp.ge.f32.partialorder %v1608, 0.0
  %vm2249 = vcmp.ge.f32.partialorder %v1609, 0.0
  %vm2250 = vcmp.ge.f32.partialorder %v1610, 0.0
  %vm2251 = vcmp.ge.f32.partialorder %v1611, 0.0
  %vm2252 = vcmp.ge.f32.partialorder %v1612, 0.0
  %vm2253 = vcmp.ge.f32.partialorder %v1613, 0.0
  %vm2254 = vcmp.ge.f32.partialorder %v1614, 0.0
  %vm2255 = vcmp.ge.f32.partialorder %v1615, 0.0
  %vm2256 = vcmp.ge.f32.partialorder %v1616, 0.0
  %vm2257 = vcmp.ge.f32.partialorder %v1617, 0.0
  %vm2258 = vcmp.ge.f32.partialorder %v1618, 0.0
  %vm2259 = vcmp.ge.f32.partialorder %v1619, 0.0
  %vm2260 = vcmp.ge.f32.partialorder %v1620, 0.0
  %vm2261 = vcmp.ge.f32.partialorder %v1621, 0.0
  %vm2262 = vcmp.ge.f32.partialorder %v1622, 0.0
  %vm2263 = vcmp.ge.f32.partialorder %v1623, 0.0
  %v2264 = vmul.f32 %v1689, %v1797
  %v2265 = vmul.f32 %v1691, %v1811
  %v2266 = vmul.f32 %v1693, %v1825
  %v2267 = vmul.f32 %v1695, %v1839
  %v2268 = vmul.f32 %v1697, %v1853
  %v2269 = vmul.f32 %v1699, %v1867
  %v2270 = vmul.f32 %v1701, %v1881
  %v2271 = vmul.f32 %v1703, %v1895
  %v2272 = vmul.f32 %v1705, %v1909
  %v2273 = vmul.f32 %v1707, %v1923
  %v2274 = vmul.f32 %v1709, %v1937
  %v2275 = vmul.f32 %v1711, %v1951
  %v2276 = vmul.f32 %v1713, %v1965
  %v2277 = vmul.f32 %v1715, %v1979
  %v2278 = vmul.f32 %v1717, %v1993
  %v2279 = vmul.f32 %v1719, %v2007
  %v2280 = vmul.f32 %v1721, %v2021
  %v2281 = vmul.f32 %v1723, %v2035
  %v2282 = vmul.f32 %v1725, %v2049
  %v2283 = vmul.f32 %v1727, %v2063
  %v2284 = vmul.f32 %v1729, %v2077
  %v2285 = vmul.f32 %v1731, %v2091
  %v2286 = vmul.f32 %v1733, %v2105
  %v2287 = vmul.f32 %v1735, %v2119
  %v2288 = vmul.f32 %v1737, %v2133
  %v2289 = vmul.f32 %v1739, %v2147
  %v2290 = vmul.f32 %v1741, %v2161
  %v2291 = vmul.f32 %v1743, %v2175
  %v2292 = vmul.f32 %v1745, %v2189
  %v2293 = vmul.f32 %v1747, %v2203
  %v2294 = vmul.f32 %v1749, %v2217
  %v2295 = vmul.f32 %v1751, %v2231
  %v2296 = vsel %vm2232, %v1797, %v2264
  %v2297 = vsel %vm2233, %v1811, %v2265
  %v2298 = vsel %vm2234, %v1825, %v2266
  %v2299 = vsel %vm2235, %v1839, %v2267
  %v2300 = vsel %vm2236, %v1853, %v2268
  %v2301 = vsel %vm2237, %v1867, %v2269
  %v2302 = vsel %vm2238, %v1881, %v2270
  %v2303 = vsel %vm2239, %v1895, %v2271
  %v2304 = vsel %vm2240, %v1909, %v2272
  %v2305 = vsel %vm2241, %v1923, %v2273
  %v2306 = vsel %vm2242, %v1937, %v2274
  %v2307 = vsel %vm2243, %v1951, %v2275
  %v2308 = vsel %vm2244, %v1965, %v2276
  %v2309 = vsel %vm2245, %v1979, %v2277
  %v2310 = vsel %vm2246, %v1993, %v2278
  %v2311 = vsel %vm2247, %v2007, %v2279
  %v2312 = vsel %vm2248, %v2021, %v2280
  %v2313 = vsel %vm2249, %v2035, %v2281
  %v2314 = vsel %vm2250, %v2049, %v2282
  %v2315 = vsel %vm2251, %v2063, %v2283
  %v2316 = vsel %vm2252, %v2077, %v2284
  %v2317 = vsel %vm2253, %v2091, %v2285
  %v2318 = vsel %vm2254, %v2105, %v2286
  %v2319 = vsel %vm2255, %v2119, %v2287
  %v2320 = vsel %vm2256, %v2133, %v2288
  %v2321 = vsel %vm2257, %v2147, %v2289
  %v2322 = vsel %vm2258, %v2161, %v2290
  %v2323 = vsel %vm2259, %v2175, %v2291
  %v2324 = vsel %vm2260, %v2189, %v2292
  %v2325 = vsel %vm2261, %v2203, %v2293
  %v2326 = vsel %vm2262, %v2217, %v2294
  %v2327 = vsel %vm2263, %v2231, %v2295
  %v2360 = vlaneseq
  %v2361 = vand.u32 %v2360, 127
  %v2362 = vperm.slane %v2296, %v2361
  %v2363 = vadd.s32 %v2361, 4294967288
  %v2364 = vperm.slane %v2297, %v2363
  %vm2365 = vcmask 130112
  %v2366 = vsel %vm2365, %v2364, %v2362
  %v2367 = vadd.s32 %v2361, 4294967280
  %v2368 = vperm.slane %v2298, %v2367
  %vm2369 = vcmask 195712
  %v2370 = vsel %vm2369, %v2368, %v2366
  %v2371 = vadd.s32 %v2361, 4294967272
  %v2372 = vperm.slane %v2299, %v2371
  %vm2373 = vcmask 261312
  %v2374 = vsel %vm2373, %v2372, %v2370
  %v2375 = vadd.s32 %v2361, 4294967264
  %v2376 = vperm.slane %v2300, %v2375
  %vm2377 = vcmask 326912
  %v2378 = vsel %vm2377, %v2376, %v2374
  %v2379 = vadd.s32 %v2361, 4294967256
  %v2380 = vperm.slane %v2301, %v2379
  %vm2381 = vcmask 392512
  %v2382 = vsel %vm2381, %v2380, %v2378
  %v2383 = vadd.s32 %v2361, 4294967248
  %v2384 = vperm.slane %v2302, %v2383
  %vm2385 = vcmask 458112
  %v2386 = vsel %vm2385, %v2384, %v2382
  %v2387 = vadd.s32 %v2361, 4294967240
  %v2388 = vperm.slane %v2303, %v2387
  %vm2389 = vcmask 523712
  %v2390 = vsel %vm2389, %v2388, %v2386
  %v2391 = vadd.s32 %v2361, 4294967232
  %v2392 = vperm.slane %v2304, %v2391
  %vm2393 = vcmask 589312
  %v2394 = vsel %vm2393, %v2392, %v2390
  %v2395 = vadd.s32 %v2361, 4294967224
  %v2396 = vperm.slane %v2305, %v2395
  %vm2397 = vcmask 654912
  %v2398 = vsel %vm2397, %v2396, %v2394
  %v2399 = vadd.s32 %v2361, 4294967216
  %v2400 = vperm.slane %v2306, %v2399
  %vm2401 = vcmask 720512
  %v2402 = vsel %vm2401, %v2400, %v2398
  %v2403 = vadd.s32 %v2361, 4294967208
  %v2404 = vperm.slane %v2307, %v2403
  %vm2405 = vcmask 786112
  %v2406 = vsel %vm2405, %v2404, %v2402
  %v2407 = vadd.s32 %v2361, 4294967200
  %v2408 = vperm.slane %v2308, %v2407
  %vm2409 = vcmask 851712
  %v2410 = vsel %vm2409, %v2408, %v2406
  %v2411 = vadd.s32 %v2361, 4294967192
  %v2412 = vperm.slane %v2309, %v2411
  %vm2413 = vcmask 917312
  %v2414 = vsel %vm2413, %v2412, %v2410
  %v2415 = vadd.s32 %v2361, 4294967184
  %v2416 = vperm.slane %v2310, %v2415
  %vm2417 = vcmask 982912
  %v2418 = vsel %vm2417, %v2416, %v2414
  %v2419 = vadd.s32 %v2361, 4294967176
  %v2420 = vperm.slane %v2311, %v2419
  %vm2421 = vcmask 1048512
  %v2422 = vsel %vm2421, %v2420, %v2418
  %v2423 = vperm.slane %v2312, %v2361
  %v2424 = vperm.slane %v2313, %v2363
  %v2425 = vsel %vm2365, %v2424, %v2423
  %v2426 = vperm.slane %v2314, %v2367
  %v2427 = vsel %vm2369, %v2426, %v2425
  %v2428 = vperm.slane %v2315, %v2371
  %v2429 = vsel %vm2373, %v2428, %v2427
  %v2430 = vperm.slane %v2316, %v2375
  %v2431 = vsel %vm2377, %v2430, %v2429
  %v2432 = vperm.slane %v2317, %v2379
  %v2433 = vsel %vm2381, %v2432, %v2431
  %v2434 = vperm.slane %v2318, %v2383
  %v2435 = vsel %vm2385, %v2434, %v2433
  %v2436 = vperm.slane %v2319, %v2387
  %v2437 = vsel %vm2389, %v2436, %v2435
  %v2438 = vperm.slane %v2320, %v2391
  %v2439 = vsel %vm2393, %v2438, %v2437
  %v2440 = vperm.slane %v2321, %v2395
  %v2441 = vsel %vm2397, %v2440, %v2439
  %v2442 = vperm.slane %v2322, %v2399
  %v2443 = vsel %vm2401, %v2442, %v2441
  %v2444 = vperm.slane %v2323, %v2403
  %v2445 = vsel %vm2405, %v2444, %v2443
  %v2446 = vperm.slane %v2324, %v2407
  %v2447 = vsel %vm2409, %v2446, %v2445
  %v2448 = vperm.slane %v2325, %v2411
  %v2449 = vsel %vm2413, %v2448, %v2447
  %v2450 = vperm.slane %v2326, %v2415
  %v2451 = vsel %vm2417, %v2450, %v2449
  %v2452 = vperm.slane %v2327, %v2419
  %v2453 = vsel %vm2421, %v2452, %v2451
  %vm2454 = vcmask 1041409
  %v2455 = vsel %vm2454, %v2453, %v2422
  %2457 = vst [vmem:[%s5] sm:$0x3] %v2455
  // Predicated region
  $region22: #{discriminator_forward.1} parent=0 // pred_check
    _
  $region23: #{discriminator_forward.1} parent=0 // pred_check_branch
    %2459 = sbr.rel (0) target = $region25
  $region24: #{discriminator_forward.1} parent=0 // pred_region
    _
  $region25: #{discriminator_forward.1} parent=0 // pred_fallthru
    _
  // Predicated region
  $region26: #{discriminator_forward.1} parent=0 // pred_check
    _
  $region27: #{discriminator_forward.1} parent=0 // pred_check_branch
    %2461 = sbr.rel (0) target = $region29
  $region28: #{discriminator_forward.1} parent=0 // pred_region
    _
  $region29: #{discriminator_forward.1} parent=0 // pred_fallthru
    _

</llo_original>
